<compile_context>
chip_gen: v7x
topology: tpu7x:2x2x1
jax: 0.10.0
libtpu: 0.0.40
codegen_flags: <defaults>
</compile_context>

<pallas_src>
import functools
import math

import jax
import jax.numpy as jnp
from jax import lax
from jax.experimental import pallas as pl
from jax.experimental.pallas import tpu as pltpu

# hparams of the original repo (global dict). 'log' branch is supported below.
hparams = {"dur_scale": "linear", "frames_multiple": 1}

_LN_EPS = 1e-5  # LayerNorm over the channel dim (eps matches nn.LayerNorm default)


def _round_up(x, m):
    return -(-x // m) * m


def _tpu_generation():
    try:
        kind = jax.devices()[0].device_kind.lower()
    except Exception:
        return None
    for g in ("v7", "v6", "v5"):
        if g in kind:
            return g
    return None


_GEN = _tpu_generation()
# v6e/v7x EUP has a bf16 path (~2x exp throughput); v5e's VPU/EUP are f32-only.
_EXP_BF16 = _GEN in ("v6", "v7")
# v7x: 64 MiB physical VMEM per TC; v5e/v6e: 128 MiB (v5e default scoped is only 16 MiB,
# so we always set vmem_limit_bytes explicitly).
_VMEM_LIMIT_BYTES = (48 << 20) if _GEN == "v7" else (96 << 20)


# ----------------------------------------------------------------------------
# Kernel 1: ConvReluNorm + gaussian 1x1 conv  ->  m  (lane-dense rows)
# ----------------------------------------------------------------------------
def _layer_norm_c(x, gamma, beta):
    # normalize over channels (last dim); two-pass variance for numerical safety
    mean = jnp.mean(x, axis=-1, keepdims=True)
    c = x - mean
    var = jnp.mean(c * c, axis=-1, keepdims=True)
    return c * lax.rsqrt(var + _LN_EPS) * gamma + beta


def pre_gauss_kernel(x_ref, mask_ref, w1_ref, w2_ref, wp_ref, wg_ref,
                     pvec_ref, bg_ref, m_ref, *, n_batch, seq_len, ksize):
    Bt, T, K = n_batch, seq_len, ksize
    N = Bt * T
    C = x_ref.shape[1]
    pad = K // 2

    x = x_ref[...]                     # [N, C] f32
    mask = mask_ref[...]               # [N, 1] f32
    p = pvec_ref[...]                  # [8, C] packed f32 params
    b1, g1, be1 = p[0:1, :], p[1:2, :], p[2:3, :]
    b2, g2, be2 = p[3:4, :], p[4:5, :], p[5:6, :]
    bp = p[6:7, :]

    # local (per-batch-element) time index of every stacked row — no integer mod
    t1 = lax.broadcasted_iota(jnp.int32, (T, 1), 0)
    t_loc = t1 if Bt == 1 else jnp.concatenate([t1] * Bt, axis=0)   # [N, 1]

    def conv_layer(h, w_ref, brow):
        # h: [N, C] (already masked). Build the shifted-window operand
        # [N, K*C] with K rolls on the FULL stacked block; rows whose window
        # would cross a batch boundary are exactly the rows the validity mask
        # zeroes, so this is identical to per-batch 'same' padding.
        # (Rolls stay f32 for robust lowering; taps cast to bf16 so the big
        #  [N, K*C] window temporary is materialized in bf16.)
        taps = []
        for k in range(K):
            off = k - pad
            shifted = pltpu.roll(h, shift=(-off) % N, axis=0)
            valid = (t_loc + off >= 0) & (t_loc + off < T)
            taps.append(jnp.where(valid, shifted, 0.0).astype(jnp.bfloat16))
        win = jnp.concatenate(taps, axis=-1)                         # [N, K*C] bf16
        return jnp.dot(win, w_ref[...], preferred_element_type=jnp.float32) + brow

    # ConvReluNorm, layer 1 (dropout p=0 -> no-op)
    h = conv_layer(x * mask, w1_ref, b1)
    h = jax.nn.relu(_layer_norm_c(h, g1, be1))
    # layer 2
    h = conv_layer(h * mask, w2_ref, b2)
    h = jax.nn.relu(_layer_norm_c(h, g2, be2))
    # 1x1 proj + residual
    h = jnp.dot(h.astype(jnp.bfloat16), wp_ref[...],
                preferred_element_type=jnp.float32) + bp
    xo = (x + h) * mask                                              # [N, C]

    # gaussian 1x1 conv -> 2 channels; split -> m (logs is unused by forward)
    g = jnp.dot(xo.astype(jnp.bfloat16), wg_ref[...],
                preferred_element_type=jnp.float32) + bg_ref[...]
    m = (jax.nn.relu(g[:, 0:1]) + 1.0) * mask                        # [N, 1]
    # store lane-dense (row layout) instead of a lane-width-1 column
    m_ref[0] = m.T                                                   # [1, N]


def _pick_batch_block(B, T_pad):
    """Smallest batch block giving a >=128-lane m row, preferring >=2 grid steps
    (v7x has 2 TensorCores); falls back gracefully for tiny problems."""
    divisors = [d for d in range(1, B + 1) if B % d == 0]
    dense = [d for d in divisors if d * T_pad >= 128]
    if dense:
        multi = [d for d in dense if B // d >= 2]
        return (multi or dense)[0]
    multi = [d for d in divisors if B // d >= 2]
    return multi[-1] if multi else B


def _full_spec(shape):
    nd = len(shape)
    return pl.BlockSpec(shape, lambda i, _nd=nd: (0,) * _nd)


def run_pre_gauss(x, x_mask, params):
    B, T, C = x.shape
    KC = params["w1"].shape[0]
    K = KC // C

    # pad the phone axis so Bt*T_pad is always a multiple of 8 (BlockSpec rule);
    # padded rows have mask=0 so they contribute nothing and m there is 0.
    T_pad = _round_up(T, 8)
    if T_pad != T:
        x = jnp.pad(x, ((0, 0), (0, T_pad - T), (0, 0)))
        x_mask = jnp.pad(x_mask, ((0, 0), (0, T_pad - T), (0, 0)))

    Bt = _pick_batch_block(B, T_pad)
    nb = B // Bt
    N = Bt * T_pad

    # TODO(synk): if the real model's C < 128 the conv/proj matmuls only use C of
    # the MXU output columns; padding C for this kernel was not applied here.
    x_flat = x.reshape(B * T_pad, C).astype(jnp.float32)
    mask_flat = x_mask.reshape(B * T_pad, 1).astype(jnp.float32)

    in_specs = [
        pl.BlockSpec((N, C), lambda i: (i, 0)),
        pl.BlockSpec((N, 1), lambda i: (i, 0)),
        _full_spec((KC, C)),         # w1 (bf16)
        _full_spec((KC, C)),         # w2 (bf16)
        _full_spec((C, C)),          # wp (bf16)
        _full_spec((C, 2)),          # wg (bf16)
        _full_spec((8, C)),          # packed f32 params (b1,g1,be1,b2,g2,be2,bp,pad)
        _full_spec((1, 2)),          # bg
    ]
    out = pl.pallas_call(
        functools.partial(pre_gauss_kernel, n_batch=Bt, seq_len=T_pad, ksize=K),
        out_shape=jax.ShapeDtypeStruct((nb, 1, N), jnp.float32),
        grid=(nb,),
        in_specs=in_specs,
        out_specs=pl.BlockSpec((1, 1, N), lambda i: (i, 0, 0)),
        compiler_params=pltpu.CompilerParams(
            dimension_semantics=("parallel",),
            vmem_limit_bytes=_VMEM_LIMIT_BYTES),
    )(x_flat, mask_flat,
      params["w1"], params["w2"], params["wp"], params["wg"],
      params["pvec"], params["bg"])
    return out.reshape(B, T_pad)[:, :T]      # [B, T_ph]


# ----------------------------------------------------------------------------
# Kernel 2: masked gaussian-attention softmax + bmm (T_mel tiled)
# ----------------------------------------------------------------------------
def attn_kernel(center_ref, x2w_ref, m2w_ref, xmask_ref, resx_ref,
                w_out_ref, attn_ref, *, mel_tile, exp_bf16):
    TM = mel_tile
    center = center_ref[0]                   # [1, T_ph] f32
    x2w = x2w_ref[0]                         # [1, T_ph] i32
    m2w = m2w_ref[0]                         # [TM, 1] i32  (column block is tiny; kept
    xmask = xmask_ref[0]                     # [1, T_ph] f32  for lowering robustness)
    resx = resx_ref[0]                       # [T_ph, Cp] bf16

    mel0 = (pl.program_id(1) * TM).astype(jnp.float32)
    pos = lax.broadcasted_iota(jnp.float32, (TM, 1), 0) + mel0       # [TM, 1]
    diff = center - pos                                              # bcast [TM, T_ph]

    # fused boolean mask (build_word_mask & y_mask & x_mask)
    mask = (m2w == x2w) & (m2w > 0) & (xmask > 0.5)                  # bool [TM, T_ph]
    logits = diff * diff * (-0.1)
    # identical math to the reference `logits - (1 - mask) * 1e9`
    mask_logits = jnp.where(mask, logits, logits - 1e9)

    mx = jnp.max(mask_logits, axis=-1, keepdims=True)
    z = mask_logits - mx
    if exp_bf16:                              # v6e/v7x: bf16 EUP path (~2x exp tput)
        e = jnp.exp(z.astype(jnp.bfloat16)).astype(jnp.float32)
    else:                                     # v5e: keep f32 (no bf16 EUP/VPU)
        e = jnp.exp(z)
    denom = jnp.sum(e, axis=-1, keepdims=True)
    # approx reciprocal on the EUP; rows sum to 1 within ~1e-3 (fine for the bmm,
    # flag if `weights` ever feeds a loss directly).
    w = e * pl.reciprocal(denom, approx=True)

    w_out_ref[0] = w.astype(w_out_ref.dtype)
    attn_ref[0] = jnp.dot(w.astype(jnp.bfloat16), resx,
                          preferred_element_type=jnp.float32)


def _attn_tile_bytes(TM, T_ph, C, w_bytes):
    f32 = 4
    live = 6 * TM * T_ph * f32            # diff/logits/mask_logits/e/w temporaries
    live += 2 * TM * T_ph * w_bytes       # double-buffered weights out block
    live += 2 * TM * C * f32              # double-buffered attn out block
    live += 2 * T_ph * C * 2              # resx bf16 (resident; budget 2x)
    live += 2 * TM * 128 * 4              # m2w column block (lane-padded)
    live += 6 * T_ph * 4                  # center / x2w / xmask rows
    return live


def _pick_mel_tile(T_mel, T_ph_pad, C_pad, w_bytes):
    budget = int(0.7 * _VMEM_LIMIT_BYTES)
    tmax = _round_up(T_mel, 8)
    cands = [t for t in (1024, 512, 256, 128, 64, 32, 16, 8) if t <= tmax] or [tmax]
    for tm in cands:
        if _attn_tile_bytes(tm, T_ph_pad, C_pad, w_bytes) <= budget:
            return tm
    return cands[-1]


def run_attn(center, x2word, mel2word, x_mask_t, res_x, weights_dtype=jnp.float32):
    B, T_mel = mel2word.shape
    T_ph = x2word.shape[1]
    C = res_x.shape[2]

    T_ph_pad = _round_up(T_ph, 128)            # lane-dense logits / weights tiles
    C_pad = _round_up(C, 128)                  # lane-dense attn store, full MXU cols
    w_bytes = jnp.dtype(weights_dtype).itemsize
    TM = _pick_mel_tile(T_mel, T_ph_pad, C_pad, w_bytes)
    T_mel_pad = _round_up(T_mel, TM)

    pad_ph, pad_mel, pad_c = T_ph_pad - T_ph, T_mel_pad - T_mel, C_pad - C
    # center padded with a huge value -> padded phone columns get exp()==0 exactly,
    # so every softmax row (even fully-masked padded mel rows) matches the reference.
    c3 = jnp.pad(center.astype(jnp.float32), ((0, 0), (0, pad_ph)),
                 constant_values=1e6)[:, None, :]
    x2w3 = jnp.pad(x2word.astype(jnp.int32), ((0, 0), (0, pad_ph)))[:, None, :]
    m2w3 = jnp.pad(mel2word.astype(jnp.int32), ((0, 0), (0, pad_mel)))[:, :, None]
    xm3 = jnp.pad(x_mask_t.astype(jnp.float32), ((0, 0), (0, 0), (0, pad_ph)))
    resx_bf = jnp.pad(res_x, ((0, 0), (0, pad_ph), (0, pad_c))).astype(jnp.bfloat16)

    weights, attn = pl.pallas_call(
        functools.partial(attn_kernel, mel_tile=TM, exp_bf16=_EXP_BF16),
        out_shape=(jax.ShapeDtypeStruct((B, T_mel_pad, T_ph_pad), weights_dtype),
                   jax.ShapeDtypeStruct((B, T_mel_pad, C_pad), jnp.float32)),
        grid=(B, T_mel_pad // TM),
        in_specs=[
            pl.BlockSpec((1, 1, T_ph_pad), lambda b, m: (b, 0, 0)),
            pl.BlockSpec((1, 1, T_ph_pad), lambda b, m: (b, 0, 0)),
            pl.BlockSpec((1, TM, 1), lambda b, m: (b, m, 0)),
            pl.BlockSpec((1, 1, T_ph_pad), lambda b, m: (b, 0, 0)),
            pl.BlockSpec((1, T_ph_pad, C_pad), lambda b, m: (b, 0, 0)),  # resident
        ],
        out_specs=(pl.BlockSpec((1, TM, T_ph_pad), lambda b, m: (b, m, 0)),
                   pl.BlockSpec((1, TM, C_pad), lambda b, m: (b, m, 0))),
        compiler_params=pltpu.CompilerParams(
            dimension_semantics=("parallel", "parallel"),
            vmem_limit_bytes=_VMEM_LIMIT_BYTES),
    )(c3, x2w3, m2w3, xm3, resx_bf)
    return weights[:, :T_mel, :T_ph], attn[:, :T_mel, :C]


# ----------------------------------------------------------------------------
# Full forward (glue in plain JAX)
# ----------------------------------------------------------------------------
def mix_gaussion_forward(params, x, x_mask, x2word, mel2word, word_len,
                         word_len_max=None, ret=None, aux_inp=None, postfix="",
                         weights_dtype=jnp.float32):
    """x: [B, T_ph, C] f32; x_mask: [B, T_ph, 1] f32; x2word/mel2word: int (0=pad);
    word_len: [B] int; word_len_max: static python int (avoids device->host sync).
    weights_dtype: pass jnp.bfloat16 to halve the biggest HBM writeback if downstream
    tolerates it (default f32 matches the reference softmax dtype).
    Returns (attn, weights, ret, mel2word)."""
    if ret is None:
        ret = {}
    res_x = x
    if aux_inp is not None:
        # forward value of the straight-through trick aux.detach()+0.1*(aux-aux.detach())
        x = x + aux_inp

    x_mask_t = jnp.transpose(x_mask, (0, 2, 1))          # [B, 1, T_ph]

    # --- Pallas kernel 1: ConvReluNorm + gaussian head ---
    m = run_pre_gauss(x, x_mask, params)                 # [B, T_ph]

    B, T_ph = x2word.shape
    if word_len_max is None:
        W = int(jnp.max(word_len))   # fallback: host sync, breaks jit
    else:
        W = int(word_len_max)
    bidx = jnp.arange(B)[:, None]

    # scatter_add of predicted per-phone durations into words (plain-JAX glue)
    dur = jnp.zeros((B, W + 1), jnp.float32).at[bidx, x2word].add(m)
    m_word = dur[:, 1:]
    ret[f"{postfix}dur"] = m_word
    if hparams["dur_scale"] == "log":
        ret[f"{postfix}dur"] = jnp.log(m_word + 1.0)

    if mel2word is None:
        # TODO(synk): inference path (mel2word=None) needs LengthRegulator; not implemented.
        raise NotImplementedError("mel2word must be provided (training path).")

    ret["mel2word"] = mel2word
    y_mask = (mel2word > 0).astype(jnp.float32)[:, :, None]
    ret["tgt_nonpadding"] = y_mask

    # mel2ph_to_dur: count mel frames per word
    cnt = jnp.zeros((B, W + 1), jnp.int32).at[bidx, mel2word].add(
        jnp.ones_like(mel2word, jnp.int32))
    dur_word = cnt[:, 1:].astype(jnp.float32)

    scale = dur_word / (m_word + 0.0001)
    scale = jnp.take_along_axis(jnp.pad(scale, ((0, 0), (1, 0))), x2word, axis=1)
    m = m * scale                                        # fwd value of m+(scale-1)*m.detach()

    cumsum = jnp.cumsum(m, axis=1)
    center = cumsum - m / 2.0                            # [B, T_ph]

    # --- Pallas kernel 2: masked softmax attention + bmm ---
    weights, attn = run_attn(center, x2word, mel2word, x_mask_t, res_x,
                             weights_dtype=weights_dtype)
    return attn, weights, ret, mel2word


# ----------------------------------------------------------------------------
# Deterministic parameter init (shapes from MixGaussion.__init__, hidden=C)
# ----------------------------------------------------------------------------
def init_params(key, C, K=5):
    ks = jax.random.split(key, 8)

    def u(k, shape, scale):
        return jax.random.uniform(k, shape, jnp.float32, -1.0, 1.0) * scale

    s_conv = 1.0 / math.sqrt(C * K)
    s_g = 1.0 / math.sqrt(C)
    w1 = u(ks[0], (C, C, K), s_conv)   # torch Conv1d layout [Cout, Cin, K]
    b1 = u(ks[1], (C,), s_conv)
    w2 = u(ks[2], (C, C, K), s_conv)
    b2 = u(ks[3], (C,), s_conv)
    # NOTE: the original module zero-inits proj (so pre(x)==x*mask at init);
    # we use a small random init here so the conv/norm path is actually exercised.
    wp = u(ks[4], (C, C, 1), 0.1)
    bp = u(ks[5], (C,), 0.1)
    wg = u(ks[6], (2, C, 1), s_g)
    bg = u(ks[7], (2,), s_g)

    def conv_w(w):   # [Cout, Cin, K] -> [K*Cin, Cout], bf16 MXU operand
        cout = w.shape[0]
        return jnp.transpose(w, (2, 1, 0)).reshape(-1, cout).astype(jnp.bfloat16)

    ones = jnp.ones((1, C), jnp.float32)
    zeros = jnp.zeros((1, C), jnp.float32)
    # pack the seven (1,C) f32 params into one (8,C) block (row 7 is padding):
    #   rows: b1, g1, be1, b2, g2, be2, bp, 0
    pvec = jnp.concatenate(
        [b1[None, :], ones, zeros, b2[None, :], ones, zeros, bp[None, :], zeros],
        axis=0).astype(jnp.float32)

    return {
        "w1": conv_w(w1), "w2": conv_w(w2),
        "wp": wp[:, :, 0].T.astype(jnp.bfloat16),
        "wg": wg[:, :, 0].T.astype(jnp.bfloat16),
        "pvec": pvec,
        "bg": bg[None, :],
    }


if __name__ == "__main__":
    key = jax.random.PRNGKey(0)
    kx, kp = jax.random.split(key, 2)

    B, T_ph, T_mel, C = 2, 8, 16, 32
    x = jax.random.normal(kx, (B, T_ph, C), jnp.float32)
    params = init_params(kp, C)

    word_len = jnp.array([4, 3], jnp.int32)
    x2word = jnp.array([[1, 1, 2, 2, 3, 3, 4, 4],
                        [1, 1, 1, 2, 2, 3, 0, 0]], jnp.int32)
    x_mask = (x2word > 0).astype(jnp.float32)[:, :, None]
    mel2word = jnp.array([[1, 1, 1, 2, 2, 2, 3, 3, 3, 4, 4, 4, 4, 0, 0, 0],
                          [1, 1, 1, 1, 2, 2, 2, 2, 3, 3, 3, 3, 0, 0, 0, 0]], jnp.int32)

    attn, weights, ret, mel2word_out = mix_gaussion_forward(
        params, x, x_mask, x2word, mel2word, word_len, word_len_max=4)

    jax.block_until_ready((attn, weights, ret["dur"], ret["tgt_nonpadding"]))
    assert attn.shape == (B, T_mel, C)
    assert weights.shape == (B, T_mel, T_ph)
    print("KERNEL_OK")
</pallas_src>

<mosaic_0001>
module attributes {stable_mosaic.version = 11 : i64} {
  func.func @pre_gauss_kernel(%arg0: i32, %arg1: memref<8x32xf32, #tpu.memory_space<vmem>>, %arg2: memref<8x1xf32, #tpu.memory_space<vmem>>, %arg3: memref<160x32xbf16, #tpu.memory_space<vmem>>, %arg4: memref<160x32xbf16, #tpu.memory_space<vmem>>, %arg5: memref<32x32xbf16, #tpu.memory_space<vmem>>, %arg6: memref<32x2xbf16, #tpu.memory_space<vmem>>, %arg7: memref<8x32xf32, #tpu.memory_space<vmem>>, %arg8: memref<1x2xf32, #tpu.memory_space<vmem>>, %arg9: memref<1x1x8xf32, #tpu.memory_space<vmem>>) attributes {dimension_semantics = [#tpu.dimension_semantics<parallel>], iteration_bounds = array<i64: 2>, scalar_prefetch = 0 : i64, scratch_operands = 0 : i64, tpu.core_type = #tpu.core_type<tc>, window_params = [{transform_indices = @transform_0, window_bounds = array<i64: 8, 32>}, {transform_indices = @transform_1, window_bounds = array<i64: 8, 1>}, {pipeline_mode = #tpu.pipeline_mode<synchronous>, transform_indices = @transform_2, window_bounds = array<i64: 160, 32>}, {pipeline_mode = #tpu.pipeline_mode<synchronous>, transform_indices = @transform_3, window_bounds = array<i64: 160, 32>}, {pipeline_mode = #tpu.pipeline_mode<synchronous>, transform_indices = @transform_4, window_bounds = array<i64: 32, 32>}, {pipeline_mode = #tpu.pipeline_mode<synchronous>, transform_indices = @transform_5, window_bounds = array<i64: 32, 2>}, {pipeline_mode = #tpu.pipeline_mode<synchronous>, transform_indices = @transform_6, window_bounds = array<i64: 8, 32>}, {pipeline_mode = #tpu.pipeline_mode<synchronous>, transform_indices = @transform_7, window_bounds = array<i64: 1, 2>}, {transform_indices = @transform_8, window_bounds = array<i64: 1, 1, 8>}]} {
    %c0 = arith.constant 0 : index
    %c0_0 = arith.constant 0 : index
    %0 = vector.load %arg1[%c0, %c0_0] : memref<8x32xf32, #tpu.memory_space<vmem>>, vector<8x32xf32>
    %c0_1 = arith.constant 0 : index
    %c0_2 = arith.constant 0 : index
    %1 = vector.load %arg2[%c0_1, %c0_2] : memref<8x1xf32, #tpu.memory_space<vmem>>, vector<8x1xf32>
    %c0_3 = arith.constant 0 : index
    %c0_4 = arith.constant 0 : index
    %2 = vector.load %arg7[%c0_3, %c0_4] : memref<8x32xf32, #tpu.memory_space<vmem>>, vector<8x32xf32>
    %3 = vector.extract_strided_slice %2 {offsets = [0, 0], sizes = [1, 32], strides = [1, 1]} : vector<8x32xf32> to vector<1x32xf32>
    %4 = vector.extract_strided_slice %2 {offsets = [1, 0], sizes = [1, 32], strides = [1, 1]} : vector<8x32xf32> to vector<1x32xf32>
    %5 = vector.extract_strided_slice %2 {offsets = [2, 0], sizes = [1, 32], strides = [1, 1]} : vector<8x32xf32> to vector<1x32xf32>
    %6 = vector.extract_strided_slice %2 {offsets = [3, 0], sizes = [1, 32], strides = [1, 1]} : vector<8x32xf32> to vector<1x32xf32>
    %7 = vector.extract_strided_slice %2 {offsets = [4, 0], sizes = [1, 32], strides = [1, 1]} : vector<8x32xf32> to vector<1x32xf32>
    %8 = vector.extract_strided_slice %2 {offsets = [5, 0], sizes = [1, 32], strides = [1, 1]} : vector<8x32xf32> to vector<1x32xf32>
    %9 = vector.extract_strided_slice %2 {offsets = [6, 0], sizes = [1, 32], strides = [1, 1]} : vector<8x32xf32> to vector<1x32xf32>
    %10 = tpu.iota {dimensions = array<i32: 0>} : vector<8x1xi32>
    %11 = vector.broadcast %1 : vector<8x1xf32> to vector<8x32xf32>
    %12 = arith.mulf %0, %11 : vector<8x32xf32>
    %c2_i32 = arith.constant 2 : i32
    %13 = tpu.dynamic_rotate %12 by %c2_i32 dim 0 : vector<8x32xf32>, i32 -> vector<8x32xf32>
    %c-2_i32 = arith.constant -2 : i32
    %14 = vector.broadcast %c-2_i32 : i32 to vector<8x1xi32>
    %15 = arith.addi %10, %14 : vector<8x1xi32>
    %c0_i32 = arith.constant 0 : i32
    %16 = vector.broadcast %c0_i32 : i32 to vector<8x1xi32>
    %17 = arith.cmpi sge, %15, %16 : vector<8x1xi32>
    %c-2_i32_5 = arith.constant -2 : i32
    %18 = vector.broadcast %c-2_i32_5 : i32 to vector<8x1xi32>
    %19 = arith.addi %10, %18 : vector<8x1xi32>
    %c8_i32 = arith.constant 8 : i32
    %20 = vector.broadcast %c8_i32 : i32 to vector<8x1xi32>
    %21 = arith.cmpi slt, %19, %20 : vector<8x1xi32>
    %22 = arith.andi %17, %21 : vector<8x1xi1>
    %cst = arith.constant 0.000000e+00 : f32
    %23 = vector.shape_cast %22 : vector<8x1xi1> to vector<8x1xi1>
    %24 = vector.broadcast %23 : vector<8x1xi1> to vector<8x32xi1>
    %25 = vector.broadcast %cst : f32 to vector<8x32xf32>
    %26 = arith.select %24, %13, %25 : vector<8x32xi1>, vector<8x32xf32>
    %27 = arith.truncf %26 : vector<8x32xf32> to vector<8x32xbf16>
    %c1_i32 = arith.constant 1 : i32
    %28 = tpu.dynamic_rotate %12 by %c1_i32 dim 0 : vector<8x32xf32>, i32 -> vector<8x32xf32>
    %c-1_i32 = arith.constant -1 : i32
    %29 = vector.broadcast %c-1_i32 : i32 to vector<8x1xi32>
    %30 = arith.addi %10, %29 : vector<8x1xi32>
    %c0_i32_6 = arith.constant 0 : i32
    %31 = vector.broadcast %c0_i32_6 : i32 to vector<8x1xi32>
    %32 = arith.cmpi sge, %30, %31 : vector<8x1xi32>
    %c-1_i32_7 = arith.constant -1 : i32
    %33 = vector.broadcast %c-1_i32_7 : i32 to vector<8x1xi32>
    %34 = arith.addi %10, %33 : vector<8x1xi32>
    %c8_i32_8 = arith.constant 8 : i32
    %35 = vector.broadcast %c8_i32_8 : i32 to vector<8x1xi32>
    %36 = arith.cmpi slt, %34, %35 : vector<8x1xi32>
    %37 = arith.andi %32, %36 : vector<8x1xi1>
    %cst_9 = arith.constant 0.000000e+00 : f32
    %38 = vector.shape_cast %37 : vector<8x1xi1> to vector<8x1xi1>
    %39 = vector.broadcast %38 : vector<8x1xi1> to vector<8x32xi1>
    %40 = vector.broadcast %cst_9 : f32 to vector<8x32xf32>
    %41 = arith.select %39, %28, %40 : vector<8x32xi1>, vector<8x32xf32>
    %42 = arith.truncf %41 : vector<8x32xf32> to vector<8x32xbf16>
    %c0_i32_10 = arith.constant 0 : i32
    %43 = tpu.dynamic_rotate %12 by %c0_i32_10 dim 0 : vector<8x32xf32>, i32 -> vector<8x32xf32>
    %c0_i32_11 = arith.constant 0 : i32
    %44 = vector.broadcast %c0_i32_11 : i32 to vector<8x1xi32>
    %45 = arith.addi %10, %44 : vector<8x1xi32>
    %c0_i32_12 = arith.constant 0 : i32
    %46 = vector.broadcast %c0_i32_12 : i32 to vector<8x1xi32>
    %47 = arith.cmpi sge, %45, %46 : vector<8x1xi32>
    %c0_i32_13 = arith.constant 0 : i32
    %48 = vector.broadcast %c0_i32_13 : i32 to vector<8x1xi32>
    %49 = arith.addi %10, %48 : vector<8x1xi32>
    %c8_i32_14 = arith.constant 8 : i32
    %50 = vector.broadcast %c8_i32_14 : i32 to vector<8x1xi32>
    %51 = arith.cmpi slt, %49, %50 : vector<8x1xi32>
    %52 = arith.andi %47, %51 : vector<8x1xi1>
    %cst_15 = arith.constant 0.000000e+00 : f32
    %53 = vector.shape_cast %52 : vector<8x1xi1> to vector<8x1xi1>
    %54 = vector.broadcast %53 : vector<8x1xi1> to vector<8x32xi1>
    %55 = vector.broadcast %cst_15 : f32 to vector<8x32xf32>
    %56 = arith.select %54, %43, %55 : vector<8x32xi1>, vector<8x32xf32>
    %57 = arith.truncf %56 : vector<8x32xf32> to vector<8x32xbf16>
    %c7_i32 = arith.constant 7 : i32
    %58 = tpu.dynamic_rotate %12 by %c7_i32 dim 0 : vector<8x32xf32>, i32 -> vector<8x32xf32>
    %c1_i32_16 = arith.constant 1 : i32
    %59 = vector.broadcast %c1_i32_16 : i32 to vector<8x1xi32>
    %60 = arith.addi %10, %59 : vector<8x1xi32>
    %c0_i32_17 = arith.constant 0 : i32
    %61 = vector.broadcast %c0_i32_17 : i32 to vector<8x1xi32>
    %62 = arith.cmpi sge, %60, %61 : vector<8x1xi32>
    %c1_i32_18 = arith.constant 1 : i32
    %63 = vector.broadcast %c1_i32_18 : i32 to vector<8x1xi32>
    %64 = arith.addi %10, %63 : vector<8x1xi32>
    %c8_i32_19 = arith.constant 8 : i32
    %65 = vector.broadcast %c8_i32_19 : i32 to vector<8x1xi32>
    %66 = arith.cmpi slt, %64, %65 : vector<8x1xi32>
    %67 = arith.andi %62, %66 : vector<8x1xi1>
    %cst_20 = arith.constant 0.000000e+00 : f32
    %68 = vector.shape_cast %67 : vector<8x1xi1> to vector<8x1xi1>
    %69 = vector.broadcast %68 : vector<8x1xi1> to vector<8x32xi1>
    %70 = vector.broadcast %cst_20 : f32 to vector<8x32xf32>
    %71 = arith.select %69, %58, %70 : vector<8x32xi1>, vector<8x32xf32>
    %72 = arith.truncf %71 : vector<8x32xf32> to vector<8x32xbf16>
    %c6_i32 = arith.constant 6 : i32
    %73 = tpu.dynamic_rotate %12 by %c6_i32 dim 0 : vector<8x32xf32>, i32 -> vector<8x32xf32>
    %c2_i32_21 = arith.constant 2 : i32
    %74 = vector.broadcast %c2_i32_21 : i32 to vector<8x1xi32>
    %75 = arith.addi %10, %74 : vector<8x1xi32>
    %c0_i32_22 = arith.constant 0 : i32
    %76 = vector.broadcast %c0_i32_22 : i32 to vector<8x1xi32>
    %77 = arith.cmpi sge, %75, %76 : vector<8x1xi32>
    %c2_i32_23 = arith.constant 2 : i32
    %78 = vector.broadcast %c2_i32_23 : i32 to vector<8x1xi32>
    %79 = arith.addi %10, %78 : vector<8x1xi32>
    %c8_i32_24 = arith.constant 8 : i32
    %80 = vector.broadcast %c8_i32_24 : i32 to vector<8x1xi32>
    %81 = arith.cmpi slt, %79, %80 : vector<8x1xi32>
    %82 = arith.andi %77, %81 : vector<8x1xi1>
    %cst_25 = arith.constant 0.000000e+00 : f32
    %83 = vector.shape_cast %82 : vector<8x1xi1> to vector<8x1xi1>
    %84 = vector.broadcast %83 : vector<8x1xi1> to vector<8x32xi1>
    %85 = vector.broadcast %cst_25 : f32 to vector<8x32xf32>
    %86 = arith.select %84, %73, %85 : vector<8x32xi1>, vector<8x32xf32>
    %87 = arith.truncf %86 : vector<8x32xf32> to vector<8x32xbf16>
    %88 = tpu.concatenate %27, %42, %57, %72, %87 in 1 : vector<8x32xbf16>, vector<8x32xbf16>, vector<8x32xbf16>, vector<8x32xbf16>, vector<8x32xbf16> -> vector<8x160xbf16>
    %c0_26 = arith.constant 0 : index
    %c0_27 = arith.constant 0 : index
    %89 = vector.load %arg3[%c0_26, %c0_27] : memref<160x32xbf16, #tpu.memory_space<vmem>>, vector<160x32xbf16>
    %cst_28 = arith.constant dense<0.000000e+00> : vector<8x32xf32>
    %90 = tpu.matmul %88, %89, %cst_28 {dimension_numbers = #tpu.dot_dimension_numbers<[1], [0], [0], [1], [0, 0, 1, 1], [], []>} : vector<8x160xbf16>, vector<160x32xbf16>, vector<8x32xf32> -> vector<8x32xf32>
    %91 = vector.broadcast %3 : vector<1x32xf32> to vector<8x32xf32>
    %92 = arith.addf %90, %91 : vector<8x32xf32>
    %cst_29 = arith.constant dense<0.000000e+00> : vector<8xf32>
    %93 = vector.multi_reduction <add>, %92, %cst_29 [1] : vector<8x32xf32> to vector<8xf32>
    %94 = vector.shape_cast %93 : vector<8xf32> to vector<8x1xf32>
    %cst_30 = arith.constant 3.200000e+01 : f32
    %95 = vector.broadcast %cst_30 : f32 to vector<8x1xf32>
    %96 = arith.divf %94, %95 : vector<8x1xf32>
    %97 = vector.broadcast %96 : vector<8x1xf32> to vector<8x32xf32>
    %98 = arith.subf %92, %97 : vector<8x32xf32>
    %99 = arith.mulf %98, %98 : vector<8x32xf32>
    %cst_31 = arith.constant dense<0.000000e+00> : vector<8xf32>
    %100 = vector.multi_reduction <add>, %99, %cst_31 [1] : vector<8x32xf32> to vector<8xf32>
    %101 = vector.shape_cast %100 : vector<8xf32> to vector<8x1xf32>
    %cst_32 = arith.constant 3.200000e+01 : f32
    %102 = vector.broadcast %cst_32 : f32 to vector<8x1xf32>
    %103 = arith.divf %101, %102 : vector<8x1xf32>
    %cst_33 = arith.constant 9.99999974E-6 : f32
    %104 = vector.broadcast %cst_33 : f32 to vector<8x1xf32>
    %105 = arith.addf %103, %104 : vector<8x1xf32>
    %106 = math.rsqrt %105 : vector<8x1xf32>
    %107 = vector.broadcast %106 : vector<8x1xf32> to vector<8x32xf32>
    %108 = arith.mulf %98, %107 : vector<8x32xf32>
    %109 = vector.broadcast %4 : vector<1x32xf32> to vector<8x32xf32>
    %110 = arith.mulf %108, %109 : vector<8x32xf32>
    %111 = vector.broadcast %5 : vector<1x32xf32> to vector<8x32xf32>
    %112 = arith.addf %110, %111 : vector<8x32xf32>
    %cst_34 = arith.constant 0.000000e+00 : f32
    %113 = vector.broadcast %cst_34 : f32 to vector<8x32xf32>
    %114 = arith.maximumf %112, %113 : vector<8x32xf32>
    %115 = vector.broadcast %1 : vector<8x1xf32> to vector<8x32xf32>
    %116 = arith.mulf %114, %115 : vector<8x32xf32>
    %c2_i32_35 = arith.constant 2 : i32
    %117 = tpu.dynamic_rotate %116 by %c2_i32_35 dim 0 : vector<8x32xf32>, i32 -> vector<8x32xf32>
    %c-2_i32_36 = arith.constant -2 : i32
    %118 = vector.broadcast %c-2_i32_36 : i32 to vector<8x1xi32>
    %119 = arith.addi %10, %118 : vector<8x1xi32>
    %c0_i32_37 = arith.constant 0 : i32
    %120 = vector.broadcast %c0_i32_37 : i32 to vector<8x1xi32>
    %121 = arith.cmpi sge, %119, %120 : vector<8x1xi32>
    %c-2_i32_38 = arith.constant -2 : i32
    %122 = vector.broadcast %c-2_i32_38 : i32 to vector<8x1xi32>
    %123 = arith.addi %10, %122 : vector<8x1xi32>
    %c8_i32_39 = arith.constant 8 : i32
    %124 = vector.broadcast %c8_i32_39 : i32 to vector<8x1xi32>
    %125 = arith.cmpi slt, %123, %124 : vector<8x1xi32>
    %126 = arith.andi %121, %125 : vector<8x1xi1>
    %cst_40 = arith.constant 0.000000e+00 : f32
    %127 = vector.shape_cast %126 : vector<8x1xi1> to vector<8x1xi1>
    %128 = vector.broadcast %127 : vector<8x1xi1> to vector<8x32xi1>
    %129 = vector.broadcast %cst_40 : f32 to vector<8x32xf32>
    %130 = arith.select %128, %117, %129 : vector<8x32xi1>, vector<8x32xf32>
    %131 = arith.truncf %130 : vector<8x32xf32> to vector<8x32xbf16>
    %c1_i32_41 = arith.constant 1 : i32
    %132 = tpu.dynamic_rotate %116 by %c1_i32_41 dim 0 : vector<8x32xf32>, i32 -> vector<8x32xf32>
    %c-1_i32_42 = arith.constant -1 : i32
    %133 = vector.broadcast %c-1_i32_42 : i32 to vector<8x1xi32>
    %134 = arith.addi %10, %133 : vector<8x1xi32>
    %c0_i32_43 = arith.constant 0 : i32
    %135 = vector.broadcast %c0_i32_43 : i32 to vector<8x1xi32>
    %136 = arith.cmpi sge, %134, %135 : vector<8x1xi32>
    %c-1_i32_44 = arith.constant -1 : i32
    %137 = vector.broadcast %c-1_i32_44 : i32 to vector<8x1xi32>
    %138 = arith.addi %10, %137 : vector<8x1xi32>
    %c8_i32_45 = arith.constant 8 : i32
    %139 = vector.broadcast %c8_i32_45 : i32 to vector<8x1xi32>
    %140 = arith.cmpi slt, %138, %139 : vector<8x1xi32>
    %141 = arith.andi %136, %140 : vector<8x1xi1>
    %cst_46 = arith.constant 0.000000e+00 : f32
    %142 = vector.shape_cast %141 : vector<8x1xi1> to vector<8x1xi1>
    %143 = vector.broadcast %142 : vector<8x1xi1> to vector<8x32xi1>
    %144 = vector.broadcast %cst_46 : f32 to vector<8x32xf32>
    %145 = arith.select %143, %132, %144 : vector<8x32xi1>, vector<8x32xf32>
    %146 = arith.truncf %145 : vector<8x32xf32> to vector<8x32xbf16>
    %c0_i32_47 = arith.constant 0 : i32
    %147 = tpu.dynamic_rotate %116 by %c0_i32_47 dim 0 : vector<8x32xf32>, i32 -> vector<8x32xf32>
    %c0_i32_48 = arith.constant 0 : i32
    %148 = vector.broadcast %c0_i32_48 : i32 to vector<8x1xi32>
    %149 = arith.addi %10, %148 : vector<8x1xi32>
    %c0_i32_49 = arith.constant 0 : i32
    %150 = vector.broadcast %c0_i32_49 : i32 to vector<8x1xi32>
    %151 = arith.cmpi sge, %149, %150 : vector<8x1xi32>
    %c0_i32_50 = arith.constant 0 : i32
    %152 = vector.broadcast %c0_i32_50 : i32 to vector<8x1xi32>
    %153 = arith.addi %10, %152 : vector<8x1xi32>
    %c8_i32_51 = arith.constant 8 : i32
    %154 = vector.broadcast %c8_i32_51 : i32 to vector<8x1xi32>
    %155 = arith.cmpi slt, %153, %154 : vector<8x1xi32>
    %156 = arith.andi %151, %155 : vector<8x1xi1>
    %cst_52 = arith.constant 0.000000e+00 : f32
    %157 = vector.shape_cast %156 : vector<8x1xi1> to vector<8x1xi1>
    %158 = vector.broadcast %157 : vector<8x1xi1> to vector<8x32xi1>
    %159 = vector.broadcast %cst_52 : f32 to vector<8x32xf32>
    %160 = arith.select %158, %147, %159 : vector<8x32xi1>, vector<8x32xf32>
    %161 = arith.truncf %160 : vector<8x32xf32> to vector<8x32xbf16>
    %c7_i32_53 = arith.constant 7 : i32
    %162 = tpu.dynamic_rotate %116 by %c7_i32_53 dim 0 : vector<8x32xf32>, i32 -> vector<8x32xf32>
    %c1_i32_54 = arith.constant 1 : i32
    %163 = vector.broadcast %c1_i32_54 : i32 to vector<8x1xi32>
    %164 = arith.addi %10, %163 : vector<8x1xi32>
    %c0_i32_55 = arith.constant 0 : i32
    %165 = vector.broadcast %c0_i32_55 : i32 to vector<8x1xi32>
    %166 = arith.cmpi sge, %164, %165 : vector<8x1xi32>
    %c1_i32_56 = arith.constant 1 : i32
    %167 = vector.broadcast %c1_i32_56 : i32 to vector<8x1xi32>
    %168 = arith.addi %10, %167 : vector<8x1xi32>
    %c8_i32_57 = arith.constant 8 : i32
    %169 = vector.broadcast %c8_i32_57 : i32 to vector<8x1xi32>
    %170 = arith.cmpi slt, %168, %169 : vector<8x1xi32>
    %171 = arith.andi %166, %170 : vector<8x1xi1>
    %cst_58 = arith.constant 0.000000e+00 : f32
    %172 = vector.shape_cast %171 : vector<8x1xi1> to vector<8x1xi1>
    %173 = vector.broadcast %172 : vector<8x1xi1> to vector<8x32xi1>
    %174 = vector.broadcast %cst_58 : f32 to vector<8x32xf32>
    %175 = arith.select %173, %162, %174 : vector<8x32xi1>, vector<8x32xf32>
    %176 = arith.truncf %175 : vector<8x32xf32> to vector<8x32xbf16>
    %c6_i32_59 = arith.constant 6 : i32
    %177 = tpu.dynamic_rotate %116 by %c6_i32_59 dim 0 : vector<8x32xf32>, i32 -> vector<8x32xf32>
    %c2_i32_60 = arith.constant 2 : i32
    %178 = vector.broadcast %c2_i32_60 : i32 to vector<8x1xi32>
    %179 = arith.addi %10, %178 : vector<8x1xi32>
    %c0_i32_61 = arith.constant 0 : i32
    %180 = vector.broadcast %c0_i32_61 : i32 to vector<8x1xi32>
    %181 = arith.cmpi sge, %179, %180 : vector<8x1xi32>
    %c2_i32_62 = arith.constant 2 : i32
    %182 = vector.broadcast %c2_i32_62 : i32 to vector<8x1xi32>
    %183 = arith.addi %10, %182 : vector<8x1xi32>
    %c8_i32_63 = arith.constant 8 : i32
    %184 = vector.broadcast %c8_i32_63 : i32 to vector<8x1xi32>
    %185 = arith.cmpi slt, %183, %184 : vector<8x1xi32>
    %186 = arith.andi %181, %185 : vector<8x1xi1>
    %cst_64 = arith.constant 0.000000e+00 : f32
    %187 = vector.shape_cast %186 : vector<8x1xi1> to vector<8x1xi1>
    %188 = vector.broadcast %187 : vector<8x1xi1> to vector<8x32xi1>
    %189 = vector.broadcast %cst_64 : f32 to vector<8x32xf32>
    %190 = arith.select %188, %177, %189 : vector<8x32xi1>, vector<8x32xf32>
    %191 = arith.truncf %190 : vector<8x32xf32> to vector<8x32xbf16>
    %192 = tpu.concatenate %131, %146, %161, %176, %191 in 1 : vector<8x32xbf16>, vector<8x32xbf16>, vector<8x32xbf16>, vector<8x32xbf16>, vector<8x32xbf16> -> vector<8x160xbf16>
    %c0_65 = arith.constant 0 : index
    %c0_66 = arith.constant 0 : index
    %193 = vector.load %arg4[%c0_65, %c0_66] : memref<160x32xbf16, #tpu.memory_space<vmem>>, vector<160x32xbf16>
    %cst_67 = arith.constant dense<0.000000e+00> : vector<8x32xf32>
    %194 = tpu.matmul %192, %193, %cst_67 {dimension_numbers = #tpu.dot_dimension_numbers<[1], [0], [0], [1], [0, 0, 1, 1], [], []>} : vector<8x160xbf16>, vector<160x32xbf16>, vector<8x32xf32> -> vector<8x32xf32>
    %195 = vector.broadcast %6 : vector<1x32xf32> to vector<8x32xf32>
    %196 = arith.addf %194, %195 : vector<8x32xf32>
    %cst_68 = arith.constant dense<0.000000e+00> : vector<8xf32>
    %197 = vector.multi_reduction <add>, %196, %cst_68 [1] : vector<8x32xf32> to vector<8xf32>
    %198 = vector.shape_cast %197 : vector<8xf32> to vector<8x1xf32>
    %cst_69 = arith.constant 3.200000e+01 : f32
    %199 = vector.broadcast %cst_69 : f32 to vector<8x1xf32>
    %200 = arith.divf %198, %199 : vector<8x1xf32>
    %201 = vector.broadcast %200 : vector<8x1xf32> to vector<8x32xf32>
    %202 = arith.subf %196, %201 : vector<8x32xf32>
    %203 = arith.mulf %202, %202 : vector<8x32xf32>
    %cst_70 = arith.constant dense<0.000000e+00> : vector<8xf32>
    %204 = vector.multi_reduction <add>, %203, %cst_70 [1] : vector<8x32xf32> to vector<8xf32>
    %205 = vector.shape_cast %204 : vector<8xf32> to vector<8x1xf32>
    %cst_71 = arith.constant 3.200000e+01 : f32
    %206 = vector.broadcast %cst_71 : f32 to vector<8x1xf32>
    %207 = arith.divf %205, %206 : vector<8x1xf32>
    %cst_72 = arith.constant 9.99999974E-6 : f32
    %208 = vector.broadcast %cst_72 : f32 to vector<8x1xf32>
    %209 = arith.addf %207, %208 : vector<8x1xf32>
    %210 = math.rsqrt %209 : vector<8x1xf32>
    %211 = vector.broadcast %210 : vector<8x1xf32> to vector<8x32xf32>
    %212 = arith.mulf %202, %211 : vector<8x32xf32>
    %213 = vector.broadcast %7 : vector<1x32xf32> to vector<8x32xf32>
    %214 = arith.mulf %212, %213 : vector<8x32xf32>
    %215 = vector.broadcast %8 : vector<1x32xf32> to vector<8x32xf32>
    %216 = arith.addf %214, %215 : vector<8x32xf32>
    %cst_73 = arith.constant 0.000000e+00 : f32
    %217 = vector.broadcast %cst_73 : f32 to vector<8x32xf32>
    %218 = arith.maximumf %216, %217 : vector<8x32xf32>
    %219 = arith.truncf %218 : vector<8x32xf32> to vector<8x32xbf16>
    %c0_74 = arith.constant 0 : index
    %c0_75 = arith.constant 0 : index
    %220 = vector.load %arg5[%c0_74, %c0_75] : memref<32x32xbf16, #tpu.memory_space<vmem>>, vector<32x32xbf16>
    %cst_76 = arith.constant dense<0.000000e+00> : vector<8x32xf32>
    %221 = tpu.matmul %219, %220, %cst_76 {dimension_numbers = #tpu.dot_dimension_numbers<[1], [0], [0], [1], [0, 0, 1, 1], [], []>} : vector<8x32xbf16>, vector<32x32xbf16>, vector<8x32xf32> -> vector<8x32xf32>
    %222 = vector.broadcast %9 : vector<1x32xf32> to vector<8x32xf32>
    %223 = arith.addf %221, %222 : vector<8x32xf32>
    %224 = arith.addf %0, %223 : vector<8x32xf32>
    %225 = vector.broadcast %1 : vector<8x1xf32> to vector<8x32xf32>
    %226 = arith.mulf %224, %225 : vector<8x32xf32>
    %227 = arith.truncf %226 : vector<8x32xf32> to vector<8x32xbf16>
    %c0_77 = arith.constant 0 : index
    %c0_78 = arith.constant 0 : index
    %228 = vector.load %arg6[%c0_77, %c0_78] : memref<32x2xbf16, #tpu.memory_space<vmem>>, vector<32x2xbf16>
    %cst_79 = arith.constant dense<0.000000e+00> : vector<8x2xf32>
    %229 = tpu.matmul %227, %228, %cst_79 {dimension_numbers = #tpu.dot_dimension_numbers<[1], [0], [0], [1], [0, 0, 1, 1], [], []>} : vector<8x32xbf16>, vector<32x2xbf16>, vector<8x2xf32> -> vector<8x2xf32>
    %c0_80 = arith.constant 0 : index
    %c0_81 = arith.constant 0 : index
    %230 = vector.load %arg8[%c0_80, %c0_81] : memref<1x2xf32, #tpu.memory_space<vmem>>, vector<1x2xf32>
    %231 = vector.broadcast %230 : vector<1x2xf32> to vector<8x2xf32>
    %232 = arith.addf %229, %231 : vector<8x2xf32>
    %233 = vector.extract_strided_slice %232 {offsets = [0, 0], sizes = [8, 1], strides = [1, 1]} : vector<8x2xf32> to vector<8x1xf32>
    %cst_82 = arith.constant 0.000000e+00 : f32
    %234 = vector.broadcast %cst_82 : f32 to vector<8x1xf32>
    %235 = arith.maximumf %233, %234 : vector<8x1xf32>
    %cst_83 = arith.constant 1.000000e+00 : f32
    %236 = vector.broadcast %cst_83 : f32 to vector<8x1xf32>
    %237 = arith.addf %235, %236 : vector<8x1xf32>
    %238 = arith.mulf %237, %1 : vector<8x1xf32>
    %239 = tpu.transpose %238, [1, 0] : vector<8x1xf32> -> vector<1x8xf32>
    %c0_84 = arith.constant 0 : index
    %c0_85 = arith.constant 0 : index
    %c0_86 = arith.constant 0 : index
    %240 = vector.load %arg9[%c0_84, %c0_85, %c0_86] : memref<1x1x8xf32, #tpu.memory_space<vmem>>, vector<1x1x8xf32>
    %241 = vector.shape_cast %240 : vector<1x1x8xf32> to vector<1x8xf32>
    %242 = vector.shape_cast %239 : vector<1x8xf32> to vector<1x1x8xf32>
    tpu.vector_store %arg9[%c0_84, %c0_85, %c0_86], %242 {strides = array<i32>} : memref<1x1x8xf32, #tpu.memory_space<vmem>>, vector<1x1x8xf32>,
    return
  }
  func.func @transform_0(%arg0: i32) -> (i32, i32) {
    %c0_i32 = arith.constant 0 : i32
    %c0_i32_0 = arith.constant 0 : i32
    return %arg0, %c0_i32 : i32, i32
  }
  func.func @transform_1(%arg0: i32) -> (i32, i32) {
    %c0_i32 = arith.constant 0 : i32
    %c0_i32_0 = arith.constant 0 : i32
    return %arg0, %c0_i32 : i32, i32
  }
  func.func @transform_2(%arg0: i32) -> (i32, i32) {
    %c0_i32 = arith.constant 0 : i32
    %c0_i32_0 = arith.constant 0 : i32
    %c0_i32_1 = arith.constant 0 : i32
    return %c0_i32, %c0_i32_0 : i32, i32
  }
  func.func @transform_3(%arg0: i32) -> (i32, i32) {
    %c0_i32 = arith.constant 0 : i32
    %c0_i32_0 = arith.constant 0 : i32
    %c0_i32_1 = arith.constant 0 : i32
    return %c0_i32, %c0_i32_0 : i32, i32
  }
  func.func @transform_4(%arg0: i32) -> (i32, i32) {
    %c0_i32 = arith.constant 0 : i32
    %c0_i32_0 = arith.constant 0 : i32
    %c0_i32_1 = arith.constant 0 : i32
    return %c0_i32, %c0_i32_0 : i32, i32
  }
  func.func @transform_5(%arg0: i32) -> (i32, i32) {
    %c0_i32 = arith.constant 0 : i32
    %c0_i32_0 = arith.constant 0 : i32
    %c0_i32_1 = arith.constant 0 : i32
    return %c0_i32, %c0_i32_0 : i32, i32
  }
  func.func @transform_6(%arg0: i32) -> (i32, i32) {
    %c0_i32 = arith.constant 0 : i32
    %c0_i32_0 = arith.constant 0 : i32
    %c0_i32_1 = arith.constant 0 : i32
    return %c0_i32, %c0_i32_0 : i32, i32
  }
  func.func @transform_7(%arg0: i32) -> (i32, i32) {
    %c0_i32 = arith.constant 0 : i32
    %c0_i32_0 = arith.constant 0 : i32
    %c0_i32_1 = arith.constant 0 : i32
    return %c0_i32, %c0_i32_0 : i32, i32
  }
  func.func @transform_8(%arg0: i32) -> (i32, i32, i32) {
    %c0_i32 = arith.constant 0 : i32
    %c0_i32_0 = arith.constant 0 : i32
    %c0_i32_1 = arith.constant 0 : i32
    return %arg0, %c0_i32, %c0_i32_0 : i32, i32, i32
  }
}

</mosaic_0001>

<llo_original>
// kernel: tpu_custom_call.1
$region0: #{tpu_custom_call.1}
  #allocation0 [shape = 'u32[]', space=smem, size = 0x4, offset = 0x4, fixed_abs, tag = 'smem constant byte address 0x4 - core index']
  #allocation1 [shape = 'u32[144,128]{1,0:T(1,128)}', space=vmem, size = 0x12000, scoped, tag = 'internal scratch']
  %s0 = inlined_call_operand.hbm [shape: f32[16,32], index: 0, kind: input, shape index: {}]
  %s1 = inlined_call_operand.hbm [shape: f32[16,1], index: 1, kind: input, shape index: {}]
  %s2 = inlined_call_operand.hbm [shape: bf16[160,32], index: 2, kind: input, shape index: {}]
  %s3 = inlined_call_operand.hbm [shape: bf16[160,32], index: 3, kind: input, shape index: {}]
  %s4 = inlined_call_operand.hbm [shape: bf16[32,32], index: 4, kind: input, shape index: {}]
  %s5 = inlined_call_operand.hbm [shape: bf16[32,2], index: 5, kind: input, shape index: {}]
  %s6 = inlined_call_operand.hbm [shape: f32[8,32], index: 6, kind: input, shape index: {}]
  %s7 = inlined_call_operand.hbm [shape: f32[1,2], index: 7, kind: input, shape index: {}]
  %s8 = inlined_call_operand.hbm [shape: f32[2,1,8], index: 8, kind: output, shape index: {}]
  %s9 = sld [smem:[#allocation0]]
  $region97: #{tpu_custom_call.1} parent=0
    _
  %s11 = ssub.s32 1, %s9
  %s12 = scalar_select 0, %s11, %s9
  $region1: #{tpu_custom_call.1} parent=0
    #allocation2 [shape = 'u8[8192]{0}', space=vmem, size = 0x2000, scoped, tag = 'input window, operand 0']
    #allocation3 [shape = 's32[2]{0}', space=sflag, size = 0x8, scoped, tag = 'scoped memory for tpu_custom_call.1']
    #allocation4 [shape = 's32[2]{0}', space=sflag, size = 0x8, scoped, tag = 'scoped memory for tpu_custom_call.1']
    #allocation5 [shape = 'u8[8192]{0}', space=vmem, size = 0x2000, scoped, tag = 'input window, operand 1']
    #allocation6 [shape = 's32[2]{0}', space=sflag, size = 0x8, scoped, tag = 'scoped memory for tpu_custom_call.1']
    #allocation7 [shape = 'u8[40960]{0}', space=vmem, size = 0xa000, scoped, tag = 'input window, operand 2, single buffered']
    #allocation8 [shape = 'u8[40960]{0}', space=vmem, size = 0xa000, scoped, tag = 'input window, operand 3, single buffered']
    #allocation9 [shape = 's32[1]{0}', space=sflag, size = 0x4, scoped, tag = 'scoped memory for tpu_custom_call.1']
    #allocation10 [shape = 'u8[8192]{0}', space=vmem, size = 0x2000, scoped, tag = 'input window, operand 4, single buffered']
    #allocation11 [shape = 'u8[8192]{0}', space=vmem, size = 0x2000, scoped, tag = 'input window, operand 5, single buffered']
    #allocation12 [shape = 's32[1]{0}', space=sflag, size = 0x4, scoped, tag = 'scoped memory for tpu_custom_call.1']
    #allocation13 [shape = 'u8[4096]{0}', space=vmem, size = 0x1000, scoped, tag = 'input window, operand 6, single buffered']
    #allocation14 [shape = 'u8[512]{0}', space=vmem, size = 0x400, scoped, tag = 'input window, operand 7, single buffered']
    #allocation15 [shape = 's32[1]{0}', space=sflag, size = 0x4, scoped, tag = 'scoped memory for tpu_custom_call.1']
    #allocation16 [shape = 'u8[1024]{0}', space=vmem, size = 0x400, scoped, tag = 'output window, operand 0']
    %13 = vsyncpa [#allocation3], 0
    %s14 = scalar_lea.sflag [#allocation3], 1
    %15 = vsyncpa %s14, 0
    %16 = vsyncpa [#allocation6], 0
    %s17 = scalar_lea.sflag [#allocation6], 1
    %18 = vsyncpa %s17, 0
    %19 = vsyncpa [#allocation9], 0
    %20 = vsyncpa [#allocation12], 0
    %21 = vsyncpa [#allocation15], 0
    %22 = vsyncpa [#allocation4], 0
    %s23 = scalar_lea.sflag [#allocation4], 1
    %24 = vsyncpa %s23, 0
    loop: start=0, step=1, limit=4
    $region2: #{tpu_custom_call.1} parent=1 // loop_pre_header
      _
    $region3: #{tpu_custom_call.1} parent=1 // loop_header
      %s26 = sphi 0, %s30
      %p27 = scmp.ge.s32.totalorder %s26, 4
      %s36 = sphi 0, %s38
      %s39 = sphi 0, %s36
      %s40 = sphi 0, %s39
      %s56 = sphi 0, %s40
      %s62 = sphi 0, %s64
      %s65 = sphi 0, %s62
      %s66 = sphi 0, %s65
      %s82 = sphi 0, %s66
      %s86 = sphi 0, %s86
      %s88 = sphi 0, %s86
      %s89 = sphi 0, %s88
      %s103 = sphi 0, %s89
      %s107 = sphi 0, %s107
      %s109 = sphi 0, %s107
      %s110 = sphi 0, %s109
      %s124 = sphi 0, %s110
      %s128 = sphi 0, %s128
      %s130 = sphi 0, %s128
      %s131 = sphi 0, %s130
      %s145 = sphi 0, %s131
      %s149 = sphi 0, %s149
      %s151 = sphi 0, %s149
      %s152 = sphi 0, %s151
      %s166 = sphi 0, %s152
      %s170 = sphi 0, %s170
      %s172 = sphi 0, %s170
      %s173 = sphi 0, %s172
      %s187 = sphi 0, %s173
      %s191 = sphi 0, %s191
      %s193 = sphi 0, %s191
      %s194 = sphi 0, %s193
      %s208 = sphi 0, %s194
      %s214 = sphi 0, %s216
      %s217 = sphi 0, %s214
      %s218 = sphi 0, %s217
      %s234 = sphi 0, %s218
    $region4: #{tpu_custom_call.1} parent=1 // loop_header_branch
      %29 = sbr.rel (%p27) target = $region8
    $region5: #{tpu_custom_call.1} parent=1 // loop_body
      %s31 = ssub.s32 %s26, 1
      %s32 = ssub.s32 %s26, 2
      %s33 = sadd.s32 %s26, 1
      %s34 = ssub.s32 %s26, %s33
      %p35 = scmp.eq.s32.totalorder %s34, 0
      %s37 = sadd.s32 %s36, 1
      %s38 = scalar_select %p35, %s36, %s37
      %p41 = pneg %p35
      %p42 = scmp.eq.s32.totalorder %s26, 1
      %p43 = por %p41, %p42
      %p44 = scmp.ne.s32.totalorder %s36, %s39
      %p45 = scmp.eq.s32.totalorder %s26, 0
      %p46 = por %p44, %p45
      %p47 = scmp.ne.s32.totalorder %s36, %s39
      %p48 = scmp.eq.s32.totalorder %s31, 1
      %p49 = por %p47, %p48
      %p50 = scmp.ne.s32.totalorder %s39, %s40
      %p51 = scmp.eq.s32.totalorder %s31, 0
      %p52 = por %p50, %p51
      %p53 = scmp.ne.s32.totalorder %s39, %s40
      %p54 = scmp.eq.s32.totalorder %s32, 1
      %p55 = por %p53, %p54
      %p57 = scmp.ne.s32.totalorder %s40, %s56
      %p58 = scmp.eq.s32.totalorder %s32, 0
      %p59 = por %p57, %p58
      %s60 = ssub.s32 %s26, %s33
      %p61 = scmp.eq.s32.totalorder %s60, 0
      %s63 = sadd.s32 %s62, 1
      %s64 = scalar_select %p61, %s62, %s63
      %p67 = pneg %p61
      %p68 = scmp.eq.s32.totalorder %s26, 1
      %p69 = por %p67, %p68
      %p70 = scmp.ne.s32.totalorder %s62, %s65
      %p71 = scmp.eq.s32.totalorder %s26, 0
      %p72 = por %p70, %p71
      %p73 = scmp.ne.s32.totalorder %s62, %s65
      %p74 = scmp.eq.s32.totalorder %s31, 1
      %p75 = por %p73, %p74
      %p76 = scmp.ne.s32.totalorder %s65, %s66
      %p77 = scmp.eq.s32.totalorder %s31, 0
      %p78 = por %p76, %p77
      %p79 = scmp.ne.s32.totalorder %s65, %s66
      %p80 = scmp.eq.s32.totalorder %s32, 1
      %p81 = por %p79, %p80
      %p83 = scmp.ne.s32.totalorder %s66, %s82
      %p84 = scmp.eq.s32.totalorder %s32, 0
      %p85 = por %p83, %p84
      %s87 = sadd.s32 %s86, 1
      %p90 = scmp.eq.s32.totalorder %s26, 1
      %p91 = scmp.ne.s32.totalorder %s86, %s88
      %p92 = scmp.eq.s32.totalorder %s26, 0
      %p93 = por %p91, %p92
      %p94 = scmp.ne.s32.totalorder %s86, %s88
      %p95 = scmp.eq.s32.totalorder %s31, 1
      %p96 = por %p94, %p95
      %p97 = scmp.ne.s32.totalorder %s88, %s89
      %p98 = scmp.eq.s32.totalorder %s31, 0
      %p99 = por %p97, %p98
      %p100 = scmp.ne.s32.totalorder %s88, %s89
      %p101 = scmp.eq.s32.totalorder %s32, 1
      %p102 = por %p100, %p101
      %p104 = scmp.ne.s32.totalorder %s89, %s103
      %p105 = scmp.eq.s32.totalorder %s32, 0
      %p106 = por %p104, %p105
      %s108 = sadd.s32 %s107, 1
      %p111 = scmp.eq.s32.totalorder %s26, 1
      %p112 = scmp.ne.s32.totalorder %s107, %s109
      %p113 = scmp.eq.s32.totalorder %s26, 0
      %p114 = por %p112, %p113
      %p115 = scmp.ne.s32.totalorder %s107, %s109
      %p116 = scmp.eq.s32.totalorder %s31, 1
      %p117 = por %p115, %p116
      %p118 = scmp.ne.s32.totalorder %s109, %s110
      %p119 = scmp.eq.s32.totalorder %s31, 0
      %p120 = por %p118, %p119
      %p121 = scmp.ne.s32.totalorder %s109, %s110
      %p122 = scmp.eq.s32.totalorder %s32, 1
      %p123 = por %p121, %p122
      %p125 = scmp.ne.s32.totalorder %s110, %s124
      %p126 = scmp.eq.s32.totalorder %s32, 0
      %p127 = por %p125, %p126
      %s129 = sadd.s32 %s128, 1
      %p132 = scmp.eq.s32.totalorder %s26, 1
      %p133 = scmp.ne.s32.totalorder %s128, %s130
      %p134 = scmp.eq.s32.totalorder %s26, 0
      %p135 = por %p133, %p134
      %p136 = scmp.ne.s32.totalorder %s128, %s130
      %p137 = scmp.eq.s32.totalorder %s31, 1
      %p138 = por %p136, %p137
      %p139 = scmp.ne.s32.totalorder %s130, %s131
      %p140 = scmp.eq.s32.totalorder %s31, 0
      %p141 = por %p139, %p140
      %p142 = scmp.ne.s32.totalorder %s130, %s131
      %p143 = scmp.eq.s32.totalorder %s32, 1
      %p144 = por %p142, %p143
      %p146 = scmp.ne.s32.totalorder %s131, %s145
      %p147 = scmp.eq.s32.totalorder %s32, 0
      %p148 = por %p146, %p147
      %s150 = sadd.s32 %s149, 1
      %p153 = scmp.eq.s32.totalorder %s26, 1
      %p154 = scmp.ne.s32.totalorder %s149, %s151
      %p155 = scmp.eq.s32.totalorder %s26, 0
      %p156 = por %p154, %p155
      %p157 = scmp.ne.s32.totalorder %s149, %s151
      %p158 = scmp.eq.s32.totalorder %s31, 1
      %p159 = por %p157, %p158
      %p160 = scmp.ne.s32.totalorder %s151, %s152
      %p161 = scmp.eq.s32.totalorder %s31, 0
      %p162 = por %p160, %p161
      %p163 = scmp.ne.s32.totalorder %s151, %s152
      %p164 = scmp.eq.s32.totalorder %s32, 1
      %p165 = por %p163, %p164
      %p167 = scmp.ne.s32.totalorder %s152, %s166
      %p168 = scmp.eq.s32.totalorder %s32, 0
      %p169 = por %p167, %p168
      %s171 = sadd.s32 %s170, 1
      %p174 = scmp.eq.s32.totalorder %s26, 1
      %p175 = scmp.ne.s32.totalorder %s170, %s172
      %p176 = scmp.eq.s32.totalorder %s26, 0
      %p177 = por %p175, %p176
      %p178 = scmp.ne.s32.totalorder %s170, %s172
      %p179 = scmp.eq.s32.totalorder %s31, 1
      %p180 = por %p178, %p179
      %p181 = scmp.ne.s32.totalorder %s172, %s173
      %p182 = scmp.eq.s32.totalorder %s31, 0
      %p183 = por %p181, %p182
      %p184 = scmp.ne.s32.totalorder %s172, %s173
      %p185 = scmp.eq.s32.totalorder %s32, 1
      %p186 = por %p184, %p185
      %p188 = scmp.ne.s32.totalorder %s173, %s187
      %p189 = scmp.eq.s32.totalorder %s32, 0
      %p190 = por %p188, %p189
      %s192 = sadd.s32 %s191, 1
      %p195 = scmp.eq.s32.totalorder %s26, 1
      %p196 = scmp.ne.s32.totalorder %s191, %s193
      %p197 = scmp.eq.s32.totalorder %s26, 0
      %p198 = por %p196, %p197
      %p199 = scmp.ne.s32.totalorder %s191, %s193
      %p200 = scmp.eq.s32.totalorder %s31, 1
      %p201 = por %p199, %p200
      %p202 = scmp.ne.s32.totalorder %s193, %s194
      %p203 = scmp.eq.s32.totalorder %s31, 0
      %p204 = por %p202, %p203
      %p205 = scmp.ne.s32.totalorder %s193, %s194
      %p206 = scmp.eq.s32.totalorder %s32, 1
      %p207 = por %p205, %p206
      %p209 = scmp.ne.s32.totalorder %s194, %s208
      %p210 = scmp.eq.s32.totalorder %s32, 0
      %p211 = por %p209, %p210
      %s212 = ssub.s32 %s26, %s33
      %p213 = scmp.eq.s32.totalorder %s212, 0
      %s215 = sadd.s32 %s214, 1
      %s216 = scalar_select %p213, %s214, %s215
      %p219 = pneg %p213
      %p220 = scmp.eq.s32.totalorder %s26, 1
      %p221 = por %p219, %p220
      %p222 = scmp.ne.s32.totalorder %s214, %s217
      %p223 = scmp.eq.s32.totalorder %s26, 0
      %p224 = por %p222, %p223
      %p225 = scmp.ne.s32.totalorder %s214, %s217
      %p226 = scmp.eq.s32.totalorder %s31, 1
      %p227 = por %p225, %p226
      %p228 = scmp.ne.s32.totalorder %s217, %s218
      %p229 = scmp.eq.s32.totalorder %s31, 0
      %p230 = por %p228, %p229
      %p231 = scmp.ne.s32.totalorder %s217, %s218
      %p232 = scmp.eq.s32.totalorder %s32, 1
      %p233 = por %p231, %p232
      %p235 = scmp.ne.s32.totalorder %s218, %s234
      %p236 = scmp.eq.s32.totalorder %s32, 0
      %p237 = por %p235, %p236
      %p238 = scmp.le.s32.totalorder 1, %s26
      %p239 = scmp.lt.s32.totalorder %s26, 3
      %p240 = pnand %p238, %p239
      %p241 = pneg %p240
      // Predicated region
      $region9: #{tpu_custom_call.1} parent=5 // pred_check
        _
      $region10: #{tpu_custom_call.1} parent=5 // pred_check_branch
        %243 = sbr.rel (%p240) target = $region12
      $region11: #{tpu_custom_call.1} parent=5 // pred_region
        %s244 = ssub.s32 %s26, 1
        // Predicated region
        $region13: #{tpu_custom_call.1} parent=11 // pred_check
          %p245 = pneg %p99
        $region14: #{tpu_custom_call.1} parent=11 // pred_check_branch
          %247 = sbr.rel (%p245) target = $region16
        $region15: #{tpu_custom_call.1} parent=11 // pred_region
          %s249 = ssub.s32 1280, 1280
          %250 = vsyncadd [#allocation6], %s249
          %s251 = sshll.u32 [#allocation7], 4
          %s252 = int_to_ptr.vmem [resolvable:$true] %s251
          %257 = dma.hbm_to_vmem [thread:$0]  %s2, 1280, %s252, [#allocation6], 64, 64, 4
        $region16: #{tpu_custom_call.1} parent=11 // pred_fallthru
          _
        // Predicated region
        $region17: #{tpu_custom_call.1} parent=11 // pred_check
          %p258 = pneg %p120
        $region18: #{tpu_custom_call.1} parent=11 // pred_check_branch
          %260 = sbr.rel (%p258) target = $region20
        $region19: #{tpu_custom_call.1} parent=11 // pred_region
          %s262 = ssub.s32 1280, 1280
          %263 = vsyncadd [#allocation9], %s262
          %s264 = sshll.u32 [#allocation8], 4
          %s265 = int_to_ptr.vmem [resolvable:$true] %s264
          %270 = dma.hbm_to_vmem [thread:$0]  %s3, 1280, %s265, [#allocation9], 64, 64, 4
        $region20: #{tpu_custom_call.1} parent=11 // pred_fallthru
          _
        // Predicated region
        $region21: #{tpu_custom_call.1} parent=11 // pred_check
          %p271 = pneg %p141
        $region22: #{tpu_custom_call.1} parent=11 // pred_check_branch
          %273 = sbr.rel (%p271) target = $region24
        $region23: #{tpu_custom_call.1} parent=11 // pred_region
          %s275 = ssub.s32 256, 256
          %276 = vsyncadd [#allocation9], %s275
          %s277 = sshll.u32 [#allocation10], 4
          %s278 = int_to_ptr.vmem [resolvable:$true] %s277
          %283 = dma.hbm_to_vmem [thread:$0]  %s4, 256, %s278, [#allocation9], 64, 64, 4
        $region24: #{tpu_custom_call.1} parent=11 // pred_fallthru
          _
        // Predicated region
        $region25: #{tpu_custom_call.1} parent=11 // pred_check
          %p284 = pneg %p162
        $region26: #{tpu_custom_call.1} parent=11 // pred_check_branch
          %286 = sbr.rel (%p284) target = $region28
        $region27: #{tpu_custom_call.1} parent=11 // pred_region
          %s288 = ssub.s32 256, 256
          %289 = vsyncadd [#allocation12], %s288
          %s290 = sshll.u32 [#allocation11], 4
          %s291 = int_to_ptr.vmem [resolvable:$true] %s290
          %296 = dma.hbm_to_vmem [thread:$0]  %s5, 256, %s291, [#allocation12], 64, 64, 4
        $region28: #{tpu_custom_call.1} parent=11 // pred_fallthru
          _
        // Predicated region
        $region29: #{tpu_custom_call.1} parent=11 // pred_check
          %p297 = pneg %p183
        $region30: #{tpu_custom_call.1} parent=11 // pred_check_branch
          %299 = sbr.rel (%p297) target = $region32
        $region31: #{tpu_custom_call.1} parent=11 // pred_region
          %s301 = ssub.s32 128, 128
          %302 = vsyncadd [#allocation12], %s301
          %s304 = sshll.u32 [#allocation13], 4
          %s305 = int_to_ptr.vmem [resolvable:$true] %s304
          %307 = dma.hbm_to_vmem [thread:$0]  %s6, 128, %s305, [#allocation12]
        $region32: #{tpu_custom_call.1} parent=11 // pred_fallthru
          _
        // Predicated region
        $region33: #{tpu_custom_call.1} parent=11 // pred_check
          %p308 = pneg %p204
        $region34: #{tpu_custom_call.1} parent=11 // pred_check_branch
          %310 = sbr.rel (%p308) target = $region36
        $region35: #{tpu_custom_call.1} parent=11 // pred_region
          %s312 = ssub.s32 16, 16
          %313 = vsyncadd [#allocation15], %s312
          %s315 = sshll.u32 [#allocation14], 4
          %s316 = int_to_ptr.vmem [resolvable:$true] %s315
          %318 = dma.hbm_to_vmem [thread:$0]  %s7, 16, %s316, [#allocation15]
        $region36: #{tpu_custom_call.1} parent=11 // pred_fallthru
          _
      $region12: #{tpu_custom_call.1} parent=5 // pred_fallthru
        _
      %p319 = scmp.lt.s32.totalorder %s26, 2
      // Predicated region
      $region37: #{tpu_custom_call.1} parent=5 // pred_check
        %p320 = pneg %p319
      $region38: #{tpu_custom_call.1} parent=5 // pred_check_branch
        %322 = sbr.rel (%p320) target = $region40
      $region39: #{tpu_custom_call.1} parent=5 // pred_region
        // Predicated region
        $region41: #{tpu_custom_call.1} parent=39 // pred_check
          %p323 = pneg %p46
        $region42: #{tpu_custom_call.1} parent=39 // pred_check_branch
          %325 = sbr.rel (%p323) target = $region44
        $region43: #{tpu_custom_call.1} parent=39 // pred_region
          %s326 = sand.u32 %s36, 1
          %s327 = scalar_lea.sflag [#allocation3], %s326
          %s328 = sand.u32 %s36, 1
          %s329 = smul.addr %s328, 8
          %s330 = scalar_lea.vmem [#allocation2], %s329
          %s332 = ssub.s32 128, 128
          %333 = vsyncadd %s327, %s332
          %s334 = smul.addr %s26, 128
          %s335 = scalar_lea.hbm %s0, %s334
          %s337 = sshll.u32 %s330, 4
          %s338 = int_to_ptr.vmem [resolvable:$true] %s337
          %340 = dma.hbm_to_vmem [thread:$0]  %s335, 128, %s338, %s327
        $region44: #{tpu_custom_call.1} parent=39 // pred_fallthru
          _
        // Predicated region
        $region45: #{tpu_custom_call.1} parent=39 // pred_check
          %p341 = pneg %p72
        $region46: #{tpu_custom_call.1} parent=39 // pred_check_branch
          %343 = sbr.rel (%p341) target = $region48
        $region47: #{tpu_custom_call.1} parent=39 // pred_region
          %s344 = sand.u32 %s26, 1
          %s345 = scalar_lea.sflag [#allocation6], %s344
          %s346 = sand.u32 %s62, 1
          %s347 = smul.addr %s346, 8
          %s348 = scalar_lea.vmem [#allocation5], %s347
          %s350 = ssub.s32 128, 128
          %351 = vsyncadd %s345, %s350
          %s352 = smul.addr %s26, 128
          %s353 = scalar_lea.hbm %s1, %s352
          %s355 = sshll.u32 %s348, 4
          %s356 = int_to_ptr.vmem [resolvable:$true] %s355
          %358 = dma.hbm_to_vmem [thread:$0]  %s353, 128, %s356, %s345
        $region48: #{tpu_custom_call.1} parent=39 // pred_fallthru
          _
      $region40: #{tpu_custom_call.1} parent=5 // pred_fallthru
        _
      %p359 = scmp.le.s32.totalorder 1, %s26
      %p360 = scmp.lt.s32.totalorder %s26, 3
      %p361 = pnand %p359, %p360
      %p362 = pneg %p361
      // Predicated region
      $region49: #{tpu_custom_call.1} parent=5 // pred_check
        _
      $region50: #{tpu_custom_call.1} parent=5 // pred_check_branch
        %364 = sbr.rel (%p361) target = $region52
      $region51: #{tpu_custom_call.1} parent=5 // pred_region
        %s365 = ssub.s32 %s26, 1
        %s366 = sand.u32 %s39, 1
        %s367 = scalar_lea.sflag [#allocation3], %s366
        %s368 = sand.u32 %s39, 1
        %s369 = smul.addr %s368, 8
        %s370 = scalar_lea.vmem [#allocation2], %s369
        // Predicated region
        $region53: #{tpu_custom_call.1} parent=51 // pred_check
          %p371 = pneg %p52
        $region54: #{tpu_custom_call.1} parent=51 // pred_check_branch
          %373 = sbr.rel (%p371) target = $region56
        $region55: #{tpu_custom_call.1} parent=51 // pred_region
          %374 = dma.done %s367, 128
        $region56: #{tpu_custom_call.1} parent=51 // pred_fallthru
          _
        %s375 = sand.u32 %s31, 1
        %s376 = scalar_lea.sflag [#allocation6], %s375
        %s377 = sand.u32 %s65, 1
        %s378 = smul.addr %s377, 8
        %s379 = scalar_lea.vmem [#allocation5], %s378
        // Predicated region
        $region57: #{tpu_custom_call.1} parent=51 // pred_check
          %p380 = pneg %p78
        $region58: #{tpu_custom_call.1} parent=51 // pred_check_branch
          %382 = sbr.rel (%p380) target = $region60
        $region59: #{tpu_custom_call.1} parent=51 // pred_region
          %383 = dma.done %s376, 128
        $region60: #{tpu_custom_call.1} parent=51 // pred_fallthru
          _
        // Predicated region
        $region61: #{tpu_custom_call.1} parent=51 // pred_check
          %p384 = pneg %p99
        $region62: #{tpu_custom_call.1} parent=51 // pred_check_branch
          %386 = sbr.rel (%p384) target = $region64
        $region63: #{tpu_custom_call.1} parent=51 // pred_region
          %387 = dma.done [#allocation6], 1280
        $region64: #{tpu_custom_call.1} parent=51 // pred_fallthru
          _
        // Predicated region
        $region65: #{tpu_custom_call.1} parent=51 // pred_check
          %p388 = pneg %p120
        $region66: #{tpu_custom_call.1} parent=51 // pred_check_branch
          %390 = sbr.rel (%p388) target = $region68
        $region67: #{tpu_custom_call.1} parent=51 // pred_region
          %391 = dma.done [#allocation9], 1280
        $region68: #{tpu_custom_call.1} parent=51 // pred_fallthru
          _
        // Predicated region
        $region69: #{tpu_custom_call.1} parent=51 // pred_check
          %p392 = pneg %p141
        $region70: #{tpu_custom_call.1} parent=51 // pred_check_branch
          %394 = sbr.rel (%p392) target = $region72
        $region71: #{tpu_custom_call.1} parent=51 // pred_region
          %395 = dma.done [#allocation9], 256
        $region72: #{tpu_custom_call.1} parent=51 // pred_fallthru
          _
        // Predicated region
        $region73: #{tpu_custom_call.1} parent=51 // pred_check
          %p396 = pneg %p162
        $region74: #{tpu_custom_call.1} parent=51 // pred_check_branch
          %398 = sbr.rel (%p396) target = $region76
        $region75: #{tpu_custom_call.1} parent=51 // pred_region
          %399 = dma.done [#allocation12], 256
        $region76: #{tpu_custom_call.1} parent=51 // pred_fallthru
          _
        // Predicated region
        $region77: #{tpu_custom_call.1} parent=51 // pred_check
          %p400 = pneg %p183
        $region78: #{tpu_custom_call.1} parent=51 // pred_check_branch
          %402 = sbr.rel (%p400) target = $region80
        $region79: #{tpu_custom_call.1} parent=51 // pred_region
          %403 = dma.done [#allocation12], 128
        $region80: #{tpu_custom_call.1} parent=51 // pred_fallthru
          _
        // Predicated region
        $region81: #{tpu_custom_call.1} parent=51 // pred_check
          %p404 = pneg %p204
        $region82: #{tpu_custom_call.1} parent=51 // pred_check_branch
          %406 = sbr.rel (%p404) target = $region84
        $region83: #{tpu_custom_call.1} parent=51 // pred_region
          %407 = dma.done [#allocation15], 16
        $region84: #{tpu_custom_call.1} parent=51 // pred_fallthru
          _
        %s408 = sand.u32 %s39, 1
        %s409 = scalar_lea.sflag [#allocation3], %s408
        %s410 = sand.u32 %s39, 1
        %s411 = smul.addr %s410, 8
        %s412 = scalar_lea.vmem [#allocation2], %s411
        %p413 = pneg %p52
        %p414 = pneg %p49
        %s415 = sand.u32 %s31, 1
        %s416 = scalar_lea.sflag [#allocation6], %s415
        %s417 = sand.u32 %s65, 1
        %s418 = smul.addr %s417, 8
        %s419 = scalar_lea.vmem [#allocation5], %s418
        %p420 = pneg %p78
        %p421 = pneg %p75
        %p422 = pneg %p99
        %p423 = pneg %p96
        %p424 = pneg %p120
        %p425 = pneg %p117
        %p426 = pneg %p141
        %p427 = pneg %p138
        %p428 = pneg %p162
        %p429 = pneg %p159
        %p430 = pneg %p183
        %p431 = pneg %p180
        %p432 = pneg %p204
        %p433 = pneg %p201
        %p434 = pneg %p230
        %p435 = pneg %p227
        %s436 = sand.u32 %s217, 1
        %s437 = scalar_lea.sflag [#allocation4], %s436
        %s438 = sand.u32 %s217, 1
        %s439 = scalar_lea.vmem [#allocation16], %s438
        %v441 = vld [vmem:[%s370] sm:$0xff]
        %v442 = vld [vmem:[%s379] sm:$0xff]
        %v443 = vld [vmem:[#allocation13] sm:$0xff]
        %v444 = vlaneseq
        %v445 = vshrl.u32 %v444, 7
        %447 = vset.pattern.permute.xlu0 0
        %448 = vperm.xlu0 %447, %v442
        %v449 = vpop.permute.xlu0 %448
        %v451 = vmul.f32 %v441, %v449
        %v452 = vrot.slane %v451, 6
        %v453 = vadd.s32 %v445, 4294967294
        %vm454 = vcmp.ge.s32.totalorder %v453, 0
        %vm455 = vcmp.lt.s32.totalorder %v453, 8
        %vm456 = vmand %vm454, %vm455
        %v457 = vsel %vm456, 1, 0
        %vm458 = vcmp.eq.s32.totalorder %v457, 1
        %v459 = vsel %vm458, %v452, 0.0
        %v460 = vpack.c.bf16 %v459, %v459
        %v461 = vrot.slane %v451, 7
        %v462 = vadd.s32 %v445, 4294967295
        %vm463 = vcmp.ge.s32.totalorder %v462, 0
        %vm464 = vcmp.lt.s32.totalorder %v462, 8
        %vm465 = vmand %vm463, %vm464
        %v466 = vsel %vm465, 1, 0
        %vm467 = vcmp.eq.s32.totalorder %v466, 1
        %v468 = vsel %vm467, %v461, 0.0
        %v469 = vpack.c.bf16 %v468, %v468
        %vm470 = vcmp.ge.s32.totalorder %v445, 0
        %vm471 = vcmp.lt.s32.totalorder %v445, 8
        %vm472 = vmand %vm470, %vm471
        %v473 = vsel %vm472, 1, 0
        %vm474 = vcmp.eq.s32.totalorder %v473, 1
        %v475 = vsel %vm474, %v451, 0.0
        %v476 = vpack.c.bf16 %v475, %v475
        %v477 = vrot.slane %v451, 1
        %v478 = vadd.s32 %v445, 1
        %vm479 = vcmp.ge.s32.totalorder %v478, 0
        %vm480 = vcmp.lt.s32.totalorder %v478, 8
        %vm481 = vmand %vm479, %vm480
        %v482 = vsel %vm481, 1, 0
        %vm483 = vcmp.eq.s32.totalorder %v482, 1
        %v484 = vsel %vm483, %v477, 0.0
        %v485 = vpack.c.bf16 %v484, %v484
        %v486 = vrot.slane %v451, 2
        %v487 = vadd.s32 %v445, 2
        %vm488 = vcmp.ge.s32.totalorder %v487, 0
        %vm489 = vcmp.lt.s32.totalorder %v487, 8
        %vm490 = vmand %vm488, %vm489
        %v491 = vsel %vm490, 1, 0
        %vm492 = vcmp.eq.s32.totalorder %v491, 1
        %v493 = vsel %vm492, %v486, 0.0
        %v494 = vpack.c.bf16 %v493, %v493
        %496 = vrot.lane.b32.xlu0 %v469, 32
        %v497 = vpop.permute.xlu0 %496
        %499 = vrot.lane.b32.xlu0 %v476, 64
        %v500 = vpop.permute.xlu0 %499
        %502 = vrot.lane.b32.xlu0 %v485, 96
        %v503 = vpop.permute.xlu0 %502
        %vm504 = vcmask 261120
        %v507 = vsel %vm504, %v460, %v497
        %vm508 = vcmask 523264
        %v510 = vsel %vm508, %v507, %v500
        %vm511 = vcmask 785408
        %v513 = vsel %vm511, %v510, %v503
        %v515 = vld [vmem:[#allocation7] sm:$0xf]
        %v516 = vld [vmem:[#allocation7 + $0x4] sm:$0xf]
        %v517 = vld [vmem:[#allocation7 + $0x8] sm:$0xf]
        %v518 = vld [vmem:[#allocation7 + $0xc] sm:$0xf]
        %v519 = vld [vmem:[#allocation7 + $0x10] sm:$0xf]
        %v520 = vld [vmem:[#allocation7 + $0x14] sm:$0xf]
        %v521 = vld [vmem:[#allocation7 + $0x18] sm:$0xf]
        %v522 = vld [vmem:[#allocation7 + $0x1c] sm:$0xf]
        %v523 = vld [vmem:[#allocation7 + $0x20] sm:$0xf]
        %v524 = vld [vmem:[#allocation7 + $0x24] sm:$0xf]
        %v525 = vld [vmem:[#allocation7 + $0x28] sm:$0xf]
        %v526 = vld [vmem:[#allocation7 + $0x2c] sm:$0xf]
        %v527 = vld [vmem:[#allocation7 + $0x30] sm:$0xf]
        %v528 = vld [vmem:[#allocation7 + $0x34] sm:$0xf]
        %v529 = vld [vmem:[#allocation7 + $0x38] sm:$0xf]
        %v530 = vld [vmem:[#allocation7 + $0x3c] sm:$0xf]
        %v531 = vld [vmem:[#allocation7 + $0x40] sm:$0xf]
        %v532 = vld [vmem:[#allocation7 + $0x44] sm:$0xf]
        %v533 = vld [vmem:[#allocation7 + $0x48] sm:$0xf]
        %v534 = vld [vmem:[#allocation7 + $0x4c] sm:$0xf]
        %v535 = vlaneseq
        %v536 = vshrl.u32 %v535, 7
        %v537 = vsub.s32 0, %v536
        %v538 = vrot.slane %v443, %v537
        %v559 = vunpack.c.l.b16 %v515
        %v560 = vunpack.c.l.b16 %v516
        %v561 = vunpack.c.l.b16 %v517
        %v562 = vunpack.c.l.b16 %v518
        %v563 = vunpack.c.l.b16 %v519
        %v564 = vunpack.c.l.b16 %v520
        %v565 = vunpack.c.l.b16 %v521
        %v566 = vunpack.c.l.b16 %v522
        %v567 = vunpack.c.l.b16 %v523
        %v568 = vunpack.c.l.b16 %v524
        %v569 = vunpack.c.l.b16 %v525
        %v570 = vunpack.c.l.b16 %v526
        %v571 = vunpack.c.l.b16 %v527
        %v572 = vunpack.c.l.b16 %v528
        %v573 = vunpack.c.l.b16 %v529
        %v574 = vunpack.c.l.b16 %v530
        %v575 = vunpack.c.l.b16 %v531
        %v576 = vunpack.c.l.b16 %v532
        %v577 = vunpack.c.l.b16 %v533
        %v578 = vunpack.c.l.b16 %v534
        %v579 = vpack.c.b16 %v560, %v559
        %v580 = vpack.c.b16 %v562, %v561
        %v581 = vpack.c.b16 %v564, %v563
        %v582 = vpack.c.b16 %v566, %v565
        %v583 = vpack.c.b16 %v568, %v567
        %v584 = vpack.c.b16 %v570, %v569
        %v585 = vpack.c.b16 %v572, %v571
        %v586 = vpack.c.b16 %v574, %v573
        %v587 = vpack.c.b16 %v576, %v575
        %v588 = vpack.c.b16 %v578, %v577
        %v600 = vsel %vm504, %v494, 0
        %602 = vmatprep.subr.bf16.mxu0 0
        %603 = vmatpush1.bf16.msra.mxu0 %v579
        %604 = vmatprep.subr.bf16.mxu0 0
        %605 = vmatpush1.bf16.msra.mxu0 %v580
        %606 = vmatprep.subr.bf16.mxu0 0
        %607 = vmatpush1.bf16.msra.mxu0 %v581
        %608 = vmatprep.subr.bf16.mxu0 0
        %609 = vmatpush1.bf16.msra.mxu0 %v582
        %610 = vmatprep.subr.bf16.mxu0 0
        %611 = vmatpush1.bf16.msra.mxu0 %v583
        %612 = vmatprep.subr.bf16.mxu0 0
        %613 = vmatpush1.bf16.msra.mxu0 %v584
        %614 = vmatprep.subr.bf16.mxu0 0
        %615 = vmatpush1.bf16.msra.mxu0 %v585
        %616 = vmatprep.subr.bf16.mxu0 0
        %617 = vmatpush1.bf16.msra.mxu0 %v586
        %618 = vmatprep.subr.bf16.mxu0 0
        %619 = vmatpush1.bf16.msra.mxu0 %v587
        %620 = vmatprep.subr.bf16.mxu0 0
        %621 = vmatpush1.bf16.msra.mxu0 %v588
        %622 = vmatprep.subr.bf16.mxu0 0
        %623 = vmatpush1.bf16.msra.mxu0 0
        %624 = vmatprep.subr.bf16.mxu0 0
        %625 = vmatpush1.bf16.msra.mxu0 0
        %626 = vmatprep.subr.bf16.mxu0 0
        %627 = vmatpush1.bf16.msra.mxu0 0
        %628 = vmatprep.subr.bf16.mxu0 0
        %629 = vmatpush1.bf16.msra.mxu0 0
        %630 = vmatprep.subr.bf16.mxu0 0
        %631 = vmatpush1.bf16.msra.mxu0 0
        %632 = vmatprep.subr.bf16.mxu0 0
        %633 = vmatpush1.bf16.msra.mxu0 0
        %634 = vmatprep.mubr.bf16.mxu0 %v600
        %635 = vmatmul.mubr.bf16.gmra.mrb[0].mxu0 %v513
        %v636 = vpop.f32.mrb[0].mxu0
        %v637 = vadd.f32 %v538, %v636
        %v638 = vpop.f32.mrb[0].mxu0
        %v639 = vpop.f32.mrb[0].mxu0
        %v640 = vpop.f32.mrb[0].mxu0
        %641 = vdwg.mxu0
        %v642 = vsel %vm504, %v637, 0.0
        %643 = vadd.xlane.f32.xlu0 %v642
        %v644 = vpop.xlane.xlu0 %643
        %v645 = vrcp.pop 32.0
        %v646 = vmul.f32 %v644, %v645
        %v647 = vsub.f32 %v637, %v646
        %v648 = vmul.f32 %v647, %v647
        %v649 = vsel %vm504, %v648, 0.0
        %650 = vadd.xlane.f32.xlu0 %v649
        %v651 = vpop.xlane.xlu0 %650
        %v652 = vmul.f32 %v651, %v645
        %v653 = vadd.f32 %v652, 1e-05
        %v654 = vrsqrt.pop %v653
        %v655 = vmul.f32 %v647, %v654
        %v656 = vlaneseq
        %v657 = vshrl.u32 %v656, 7
        %v658 = vsub.s32 1, %v657
        %v659 = vrot.slane %v443, %v658
        %v660 = vmul.f32 %v655, %v659
        %v661 = vlaneseq
        %v662 = vshrl.u32 %v661, 7
        %v663 = vsub.s32 2, %v662
        %v664 = vrot.slane %v443, %v663
        %v665 = vadd.f32 %v660, %v664
        %v666 = vmax.f32 %v665, 0.0
        %v667 = vmul.f32 %v666, %v449
        %v668 = vrot.slane %v667, 6
        %v669 = vsel %vm458, %v668, 0.0
        %v670 = vpack.c.bf16 %v669, %v669
        %v671 = vrot.slane %v667, 7
        %v672 = vsel %vm467, %v671, 0.0
        %v673 = vpack.c.bf16 %v672, %v672
        %v674 = vsel %vm474, %v667, 0.0
        %v675 = vpack.c.bf16 %v674, %v674
        %v676 = vrot.slane %v667, 1
        %v677 = vsel %vm483, %v676, 0.0
        %v678 = vpack.c.bf16 %v677, %v677
        %v679 = vrot.slane %v667, 2
        %v680 = vsel %vm492, %v679, 0.0
        %v681 = vpack.c.bf16 %v680, %v680
        %683 = vrot.lane.b32.xlu0 %v673, 32
        %v684 = vpop.permute.xlu0 %683
        %686 = vrot.lane.b32.xlu0 %v675, 64
        %v687 = vpop.permute.xlu0 %686
        %689 = vrot.lane.b32.xlu0 %v678, 96
        %v690 = vpop.permute.xlu0 %689
        %v693 = vsel %vm504, %v670, %v684
        %v695 = vsel %vm508, %v693, %v687
        %v697 = vsel %vm511, %v695, %v690
        %v699 = vld [vmem:[#allocation8] sm:$0xf]
        %v700 = vld [vmem:[#allocation8 + $0x4] sm:$0xf]
        %v701 = vld [vmem:[#allocation8 + $0x8] sm:$0xf]
        %v702 = vld [vmem:[#allocation8 + $0xc] sm:$0xf]
        %v703 = vld [vmem:[#allocation8 + $0x10] sm:$0xf]
        %v704 = vld [vmem:[#allocation8 + $0x14] sm:$0xf]
        %v705 = vld [vmem:[#allocation8 + $0x18] sm:$0xf]
        %v706 = vld [vmem:[#allocation8 + $0x1c] sm:$0xf]
        %v707 = vld [vmem:[#allocation8 + $0x20] sm:$0xf]
        %v708 = vld [vmem:[#allocation8 + $0x24] sm:$0xf]
        %v709 = vld [vmem:[#allocation8 + $0x28] sm:$0xf]
        %v710 = vld [vmem:[#allocation8 + $0x2c] sm:$0xf]
        %v711 = vld [vmem:[#allocation8 + $0x30] sm:$0xf]
        %v712 = vld [vmem:[#allocation8 + $0x34] sm:$0xf]
        %v713 = vld [vmem:[#allocation8 + $0x38] sm:$0xf]
        %v714 = vld [vmem:[#allocation8 + $0x3c] sm:$0xf]
        %v715 = vld [vmem:[#allocation8 + $0x40] sm:$0xf]
        %v716 = vld [vmem:[#allocation8 + $0x44] sm:$0xf]
        %v717 = vld [vmem:[#allocation8 + $0x48] sm:$0xf]
        %v718 = vld [vmem:[#allocation8 + $0x4c] sm:$0xf]
        %v719 = vlaneseq
        %v720 = vshrl.u32 %v719, 7
        %v721 = vsub.s32 3, %v720
        %v722 = vrot.slane %v443, %v721
        %v743 = vunpack.c.l.b16 %v699
        %v744 = vunpack.c.l.b16 %v700
        %v745 = vunpack.c.l.b16 %v701
        %v746 = vunpack.c.l.b16 %v702
        %v747 = vunpack.c.l.b16 %v703
        %v748 = vunpack.c.l.b16 %v704
        %v749 = vunpack.c.l.b16 %v705
        %v750 = vunpack.c.l.b16 %v706
        %v751 = vunpack.c.l.b16 %v707
        %v752 = vunpack.c.l.b16 %v708
        %v753 = vunpack.c.l.b16 %v709
        %v754 = vunpack.c.l.b16 %v710
        %v755 = vunpack.c.l.b16 %v711
        %v756 = vunpack.c.l.b16 %v712
        %v757 = vunpack.c.l.b16 %v713
        %v758 = vunpack.c.l.b16 %v714
        %v759 = vunpack.c.l.b16 %v715
        %v760 = vunpack.c.l.b16 %v716
        %v761 = vunpack.c.l.b16 %v717
        %v762 = vunpack.c.l.b16 %v718
        %v763 = vpack.c.b16 %v744, %v743
        %v764 = vpack.c.b16 %v746, %v745
        %v765 = vpack.c.b16 %v748, %v747
        %v766 = vpack.c.b16 %v750, %v749
        %v767 = vpack.c.b16 %v752, %v751
        %v768 = vpack.c.b16 %v754, %v753
        %v769 = vpack.c.b16 %v756, %v755
        %v770 = vpack.c.b16 %v758, %v757
        %v771 = vpack.c.b16 %v760, %v759
        %v772 = vpack.c.b16 %v762, %v761
        %v784 = vsel %vm504, %v681, 0
        %786 = vmatprep.subr.bf16.mxu0 0
        %787 = vmatpush1.bf16.msra.mxu0 %v763
        %788 = vmatprep.subr.bf16.mxu0 0
        %789 = vmatpush1.bf16.msra.mxu0 %v764
        %790 = vmatprep.subr.bf16.mxu0 0
        %791 = vmatpush1.bf16.msra.mxu0 %v765
        %792 = vmatprep.subr.bf16.mxu0 0
        %793 = vmatpush1.bf16.msra.mxu0 %v766
        %794 = vmatprep.subr.bf16.mxu0 0
        %795 = vmatpush1.bf16.msra.mxu0 %v767
        %796 = vmatprep.subr.bf16.mxu0 0
        %797 = vmatpush1.bf16.msra.mxu0 %v768
        %798 = vmatprep.subr.bf16.mxu0 0
        %799 = vmatpush1.bf16.msra.mxu0 %v769
        %800 = vmatprep.subr.bf16.mxu0 0
        %801 = vmatpush1.bf16.msra.mxu0 %v770
        %802 = vmatprep.subr.bf16.mxu0 0
        %803 = vmatpush1.bf16.msra.mxu0 %v771
        %804 = vmatprep.subr.bf16.mxu0 0
        %805 = vmatpush1.bf16.msra.mxu0 %v772
        %806 = vmatprep.subr.bf16.mxu0 0
        %807 = vmatpush1.bf16.msra.mxu0 0
        %808 = vmatprep.subr.bf16.mxu0 0
        %809 = vmatpush1.bf16.msra.mxu0 0
        %810 = vmatprep.subr.bf16.mxu0 0
        %811 = vmatpush1.bf16.msra.mxu0 0
        %812 = vmatprep.subr.bf16.mxu0 0
        %813 = vmatpush1.bf16.msra.mxu0 0
        %814 = vmatprep.subr.bf16.mxu0 0
        %815 = vmatpush1.bf16.msra.mxu0 0
        %816 = vmatprep.subr.bf16.mxu0 0
        %817 = vmatpush1.bf16.msra.mxu0 0
        %818 = vmatprep.mubr.bf16.mxu0 %v784
        %819 = vmatmul.mubr.bf16.gmra.mrb[0].mxu0 %v697
        %v820 = vpop.f32.mrb[0].mxu0
        %v821 = vadd.f32 %v722, %v820
        %v822 = vpop.f32.mrb[0].mxu0
        %v823 = vpop.f32.mrb[0].mxu0
        %v824 = vpop.f32.mrb[0].mxu0
        %825 = vdwg.mxu0
        %v826 = vsel %vm504, %v821, 0.0
        %827 = vadd.xlane.f32.xlu0 %v826
        %v828 = vpop.xlane.xlu0 %827
        %v829 = vmul.f32 %v828, %v645
        %v830 = vsub.f32 %v821, %v829
        %v831 = vmul.f32 %v830, %v830
        %v832 = vsel %vm504, %v831, 0.0
        %833 = vadd.xlane.f32.xlu0 %v832
        %v834 = vpop.xlane.xlu0 %833
        %v835 = vmul.f32 %v834, %v645
        %v836 = vadd.f32 %v835, 1e-05
        %v837 = vrsqrt.pop %v836
        %v838 = vmul.f32 %v830, %v837
        %v839 = vlaneseq
        %v840 = vshrl.u32 %v839, 7
        %v841 = vsub.s32 4, %v840
        %v842 = vrot.slane %v443, %v841
        %v843 = vmul.f32 %v838, %v842
        %v844 = vlaneseq
        %v845 = vshrl.u32 %v844, 7
        %v846 = vsub.s32 5, %v845
        %v847 = vrot.slane %v443, %v846
        %v848 = vadd.f32 %v843, %v847
        %v849 = vmax.f32 %v848, 0.0
        %v850 = vpack.c.bf16 %v849, %v849
        %v851 = vld [vmem:[#allocation10] sm:$0xf]
        %v852 = vld [vmem:[#allocation10 + $0x4] sm:$0xf]
        %v853 = vld [vmem:[#allocation10 + $0x8] sm:$0xf]
        %v854 = vld [vmem:[#allocation10 + $0xc] sm:$0xf]
        %v855 = vlaneseq
        %v856 = vshrl.u32 %v855, 7
        %v857 = vsub.s32 6, %v856
        %v858 = vrot.slane %v443, %v857
        %v863 = vunpack.c.l.b16 %v851
        %v864 = vunpack.c.l.b16 %v852
        %v865 = vunpack.c.l.b16 %v853
        %v866 = vunpack.c.l.b16 %v854
        %v867 = vpack.c.b16 %v864, %v863
        %v868 = vpack.c.b16 %v866, %v865
        %v872 = vsel %vm504, %v850, 0
        %874 = vmatprep.subr.bf16.mxu0 0
        %875 = vmatpush1.bf16.msra.mxu0 %v867
        %876 = vmatprep.subr.bf16.mxu0 0
        %877 = vmatpush1.bf16.msra.mxu0 %v868
        %878 = vmatprep.subr.bf16.mxu0 0
        %879 = vmatpush1.bf16.msra.mxu0 0
        %880 = vmatprep.subr.bf16.mxu0 0
        %881 = vmatpush1.bf16.msra.mxu0 0
        %882 = vmatprep.subr.bf16.mxu0 0
        %883 = vmatpush1.bf16.msra.mxu0 0
        %884 = vmatprep.subr.bf16.mxu0 0
        %885 = vmatpush1.bf16.msra.mxu0 0
        %886 = vmatprep.subr.bf16.mxu0 0
        %887 = vmatpush1.bf16.msra.mxu0 0
        %888 = vmatprep.subr.bf16.mxu0 0
        %889 = vmatpush1.bf16.msra.mxu0 0
        %890 = vmatprep.subr.bf16.mxu0 0
        %891 = vmatpush1.bf16.msra.mxu0 0
        %892 = vmatprep.subr.bf16.mxu0 0
        %893 = vmatpush1.bf16.msra.mxu0 0
        %894 = vmatprep.subr.bf16.mxu0 0
        %895 = vmatpush1.bf16.msra.mxu0 0
        %896 = vmatprep.subr.bf16.mxu0 0
        %897 = vmatpush1.bf16.msra.mxu0 0
        %898 = vmatprep.subr.bf16.mxu0 0
        %899 = vmatpush1.bf16.msra.mxu0 0
        %900 = vmatprep.subr.bf16.mxu0 0
        %901 = vmatpush1.bf16.msra.mxu0 0
        %902 = vmatprep.subr.bf16.mxu0 0
        %903 = vmatpush1.bf16.msra.mxu0 0
        %904 = vmatprep.subr.bf16.mxu0 0
        %905 = vmatpush1.bf16.msra.mxu0 0
        %906 = vmatprep.mubr.bf16.mxu0 0
        %907 = vmatmul.mubr.bf16.gmra.mrb[0].mxu0 %v872
        %v908 = vpop.f32.mrb[0].mxu0
        %v909 = vadd.f32 %v858, %v908
        %v910 = vpop.f32.mrb[0].mxu0
        %v911 = vpop.f32.mrb[0].mxu0
        %v912 = vpop.f32.mrb[0].mxu0
        %913 = vdwg.mxu0
        %v914 = vadd.f32 %v441, %v909
        %v915 = vmul.f32 %v914, %v449
        %v916 = vpack.c.bf16 %v915, %v915
        %v917 = vld [vmem:[#allocation11] sm:$0xf]
        %v918 = vld [vmem:[#allocation11 + $0x4] sm:$0xf]
        %v919 = vld [vmem:[#allocation11 + $0x8] sm:$0xf]
        %v920 = vld [vmem:[#allocation11 + $0xc] sm:$0xf]
        %v921 = vld [vmem:[#allocation14] sm:$0x1]
        %v923 = vlaneseq
        %v924 = vshrl.u32 %v923, 7
        %v925 = vsub.s32 0, %v924
        %v926 = vrot.slane %v921, %v925
        %v932 = vunpack.c.l.b16 %v917
        %v933 = vunpack.c.l.b16 %v918
        %v934 = vunpack.c.l.b16 %v919
        %v935 = vunpack.c.l.b16 %v920
        %v936 = vpack.c.b16 %v933, %v932
        %v937 = vpack.c.b16 %v935, %v934
        %v941 = vsel %vm504, %v916, 0
        %943 = vmatprep.subr.bf16.mxu0 0
        %944 = vmatpush1.bf16.msra.mxu0 %v936
        %945 = vmatprep.subr.bf16.mxu0 0
        %946 = vmatpush1.bf16.msra.mxu0 %v937
        %947 = vmatprep.subr.bf16.mxu0 0
        %948 = vmatpush1.bf16.msra.mxu0 0
        %949 = vmatprep.subr.bf16.mxu0 0
        %950 = vmatpush1.bf16.msra.mxu0 0
        %951 = vmatprep.subr.bf16.mxu0 0
        %952 = vmatpush1.bf16.msra.mxu0 0
        %953 = vmatprep.subr.bf16.mxu0 0
        %954 = vmatpush1.bf16.msra.mxu0 0
        %955 = vmatprep.subr.bf16.mxu0 0
        %956 = vmatpush1.bf16.msra.mxu0 0
        %957 = vmatprep.subr.bf16.mxu0 0
        %958 = vmatpush1.bf16.msra.mxu0 0
        %959 = vmatprep.subr.bf16.mxu0 0
        %960 = vmatpush1.bf16.msra.mxu0 0
        %961 = vmatprep.subr.bf16.mxu0 0
        %962 = vmatpush1.bf16.msra.mxu0 0
        %963 = vmatprep.subr.bf16.mxu0 0
        %964 = vmatpush1.bf16.msra.mxu0 0
        %965 = vmatprep.subr.bf16.mxu0 0
        %966 = vmatpush1.bf16.msra.mxu0 0
        %967 = vmatprep.subr.bf16.mxu0 0
        %968 = vmatpush1.bf16.msra.mxu0 0
        %969 = vmatprep.subr.bf16.mxu0 0
        %970 = vmatpush1.bf16.msra.mxu0 0
        %971 = vmatprep.subr.bf16.mxu0 0
        %972 = vmatpush1.bf16.msra.mxu0 0
        %973 = vmatprep.subr.bf16.mxu0 0
        %974 = vmatpush1.bf16.msra.mxu0 0
        %975 = vmatprep.mubr.bf16.mxu0 0
        %976 = vmatmul.mubr.bf16.gmra.mrb[0].mxu0 %v941
        %v977 = vpop.f32.mrb[0].mxu0
        %v978 = vadd.f32 %v926, %v977
        %v979 = vpop.f32.mrb[0].mxu0
        %v980 = vpop.f32.mrb[0].mxu0
        %v981 = vpop.f32.mrb[0].mxu0
        %982 = vdwg.mxu0
        %v983 = vmax.f32 %v978, 0.0
        %v984 = vadd.f32 %v983, 1.0
        %v985 = vmul.f32 %v984, %v442
        %986 = vxpose.xlu0.b32.start [1/16] %v985, 128
        %987 = vxpose.xlu0.b32.cont [2/16] 0.0, 128
        %988 = vxpose.xlu0.b32.cont [3/16] 0.0, 128
        %989 = vxpose.xlu0.b32.cont [4/16] 0.0, 128
        %990 = vxpose.xlu0.b32.cont [5/16] 0.0, 128
        %991 = vxpose.xlu0.b32.cont [6/16] 0.0, 128
        %992 = vxpose.xlu0.b32.cont [7/16] 0.0, 128
        %993 = vxpose.xlu0.b32.cont [8/16] 0.0, 128
        %994 = vxpose.xlu0.b32.cont [9/16] 0.0, 128
        %995 = vxpose.xlu0.b32.cont [10/16] 0.0, 128
        %996 = vxpose.xlu0.b32.cont [11/16] 0.0, 128
        %997 = vxpose.xlu0.b32.cont [12/16] 0.0, 128
        %998 = vxpose.xlu0.b32.cont [13/16] 0.0, 128
        %999 = vxpose.xlu0.b32.cont [14/16] 0.0, 128
        %1000 = vxpose.xlu0.b32.cont [15/16] 0.0, 128
        %1001 = vxpose.xlu0.b32.end [16/16] 0.0, 128
        %v1002 = vpop.trf.xlu0
        %v1003 = vpop.trf.xlu0
        %v1004 = vpop.trf.xlu0
        %v1005 = vpop.trf.xlu0
        %v1006 = vpop.trf.xlu0
        %v1007 = vpop.trf.xlu0
        %v1008 = vpop.trf.xlu0
        %v1009 = vpop.trf.xlu0
        %v1010 = vpop.trf.xlu0
        %v1011 = vpop.trf.xlu0
        %v1012 = vpop.trf.xlu0
        %v1013 = vpop.trf.xlu0
        %v1014 = vpop.trf.xlu0
        %v1015 = vpop.trf.xlu0
        %v1016 = vpop.trf.xlu0
        %v1017 = vpop.trf.xlu0
        %vm1018 = vcmask 57344
        %1019 = vst.msk [vmem:[%s439] sm:$0x1] %vm1018, %v1002
        %s1020 = sand.u32 %s217, 1
        %s1021 = scalar_lea.sflag [#allocation4], %s1020
        %s1022 = sand.u32 %s217, 1
        %s1023 = scalar_lea.vmem [#allocation16], %s1022
        // Predicated region
        $region85: #{tpu_custom_call.1} parent=51 // pred_check
          %p1024 = pneg %p227
        $region86: #{tpu_custom_call.1} parent=51 // pred_check_branch
          %1026 = sbr.rel (%p1024) target = $region88
        $region87: #{tpu_custom_call.1} parent=51 // pred_region
          %s1028 = ssub.s32 16, 16
          %1029 = vsyncadd %s1021, %s1028
          %s1030 = smul.addr %s31, 16
          %s1031 = scalar_lea.hbm %s8, %s1030
          %s1033 = sshll.u32 %s1023, 4
          %s1034 = int_to_ptr.vmem [resolvable:$true] %s1033
          %1036 = dma.vmem_to_hbm [thread:$0]  %s1034, 16, %s1031, %s1021
        $region88: #{tpu_custom_call.1} parent=51 // pred_fallthru
          _
      $region52: #{tpu_custom_call.1} parent=5 // pred_fallthru
        _
      %p1037 = scmp.le.s32.totalorder 2, %s26
      // Predicated region
      $region89: #{tpu_custom_call.1} parent=5 // pred_check
        %p1038 = pneg %p1037
      $region90: #{tpu_custom_call.1} parent=5 // pred_check_branch
        %1040 = sbr.rel (%p1038) target = $region92
      $region91: #{tpu_custom_call.1} parent=5 // pred_region
        %s1041 = ssub.s32 %s26, 2
        // Predicated region
        $region93: #{tpu_custom_call.1} parent=91 // pred_check
          %p1042 = pneg %p233
        $region94: #{tpu_custom_call.1} parent=91 // pred_check_branch
          %1044 = sbr.rel (%p1042) target = $region96
        $region95: #{tpu_custom_call.1} parent=91 // pred_region
          %s1045 = sand.u32 %s218, 1
          %s1046 = scalar_lea.sflag [#allocation4], %s1045
          %s1047 = sand.u32 %s218, 1
          %s1048 = scalar_lea.vmem [#allocation16], %s1047
          %1049 = dma.done %s1046, 16
        $region96: #{tpu_custom_call.1} parent=91 // pred_fallthru
          _
      $region92: #{tpu_custom_call.1} parent=5 // pred_fallthru
        _
    $region6: #{tpu_custom_call.1} parent=1 // loop_footer
      %s30 = sadd.s32 1, %s26
    $region7: #{tpu_custom_call.1} parent=1 // loop_footer_branch
      %25 = sbr.rel target = $region3
    $region8: #{tpu_custom_call.1} parent=1 // loop_exit
      _
    %1050 = vsyncpa [#allocation3], 1
    %s1051 = scalar_lea.sflag [#allocation3], 1
    %1052 = vsyncpa %s1051, 1
    %1053 = vsyncpa [#allocation6], 1
    %s1054 = scalar_lea.sflag [#allocation6], 1
    %1055 = vsyncpa %s1054, 1
    %1056 = vsyncpa [#allocation9], 1
    %1057 = vsyncpa [#allocation12], 1
    %1058 = vsyncpa [#allocation15], 1
    %1059 = vsyncpa [#allocation4], 1
    %s1060 = scalar_lea.sflag [#allocation4], 1
    %1061 = vsyncpa %s1060, 1

</llo_original>
